<compile_context>
chip_gen: v7x
topology: tpu7x:2x2x1
jax: 0.10.0
libtpu: 0.0.40
codegen_flags: <defaults>
</compile_context>

<pallas_src>
import jax
import jax.numpy as jnp
from jax.experimental import pallas as pl
from jax.experimental.pallas import tpu as pltpu


def _round_up(n: int, m: int) -> int:
    return ((n + m - 1) // m) * m


# ----------------------------------------------------------------------------- kernel
def _resblock_kernel(x_ref, gamma_ref, beta_ref, w1_ref, b1_ref, w2_ref, b2_ref,
                     o_ref, acc_ref, xn_ref):
    hp = pl.program_id(1)

    @pl.when(hp == 0)
    def _():
        x = x_ref[...].astype(jnp.float32)                       # [TB, D]
        # Fused LayerNorm statistics (single pass): var = E[x^2] - mean^2, eps=1e-5.
        mean = jnp.mean(x, axis=-1, keepdims=True)
        var = jnp.mean(x * x, axis=-1, keepdims=True) - mean * mean
        xn = (x - mean) * jax.lax.rsqrt(var + 1e-5)
        xn = xn * gamma_ref[...] + beta_ref[...]
        xn_ref[...] = xn.astype(jnp.bfloat16)                    # cached MXU operand
        acc_ref[...] = jnp.zeros_like(acc_ref)

    # ---- Linear1 slice (bf16 on the MXU, f32 accumulation) + tanh GELU (EUP).
    h = jnp.dot(xn_ref[...], w1_ref[...], preferred_element_type=jnp.float32)  # [TB, TH]
    h = h + b1_ref[...]
    h = jax.nn.gelu(h, approximate=True)
    # TODO(synk): on v6e/v7x the bias-add + GELU could run in bf16 to halve VALU/EUP work.

    # ---- Dropout(p=0.2): identity in eval mode.
    # TODO(synk): training-mode dropout would need pltpu.prng_seed / prng_random_bits.

    # ---- Linear2 slice accumulated in f32.
    acc_ref[...] += jnp.dot(h.astype(jnp.bfloat16), w2_ref[...],
                            preferred_element_type=jnp.float32)  # [TB, D]

    @pl.when(hp == pl.num_programs(1) - 1)
    def _():
        x = x_ref[...].astype(jnp.float32)
        o_ref[...] = (x + acc_ref[...] + b2_ref[...]).astype(o_ref.dtype)


# --------------------------------------------------------------------------- wrappers
def prepare_params(gamma, beta, w1, b1, w2, b2):
    """One-time weight preparation (hoisted out of the forward path):
    pad the hidden dim to the 128-lane width and cast matmul weights to bf16."""
    D, H = w1.shape
    Hp = _round_up(H, 128)
    gamma = jnp.asarray(gamma, jnp.float32).reshape(1, D)
    beta = jnp.asarray(beta, jnp.float32).reshape(1, D)
    b1 = jnp.asarray(b1, jnp.float32).reshape(1, H)
    b2 = jnp.asarray(b2, jnp.float32).reshape(1, D)
    if Hp != H:
        w1 = jnp.pad(w1, ((0, 0), (0, Hp - H)))
        b1 = jnp.pad(b1, ((0, 0), (0, Hp - H)))
        w2 = jnp.pad(w2, ((0, Hp - H), (0, 0)))
    return (gamma, beta, w1.astype(jnp.bfloat16), b1, w2.astype(jnp.bfloat16), b2)


def _default_row_tile():
    try:
        kind = jax.devices()[0].device_kind.lower()
        if "v5 lite" in kind or "v5e" in kind or "v5litepod" in kind:
            return 128          # v5e MXU is 128-row; smaller tiles overlap DMA better
    except Exception:
        pass
    return 256


def _vmem_cap_bytes():
    # ~80% of physical VMEM (~51 MiB on v7x, ~102 MiB on v5e/v6e); conservative fallback.
    try:
        return int(0.8 * pltpu.get_tpu_info().vmem_capacity_bytes)
    except Exception:
        return 48 * 1024 * 1024


def _build_specs(TB, D, TH, n_h, single_buffer):
    def spec(shape, index_map, resident):
        if resident and single_buffer and hasattr(pl, "Buffered"):
            try:
                return pl.BlockSpec(shape, index_map, pipeline_mode=pl.Buffered(1))
            except TypeError:
                pass
        return pl.BlockSpec(shape, index_map)

    w_res = (n_h == 1)           # weights fully resident -> no double buffer needed
    in_specs = [
        pl.BlockSpec((TB, D), lambda i, h: (i, 0)),        # x row tile
        spec((1, D), lambda i, h: (0, 0), True),           # gamma
        spec((1, D), lambda i, h: (0, 0), True),           # beta
        spec((D, TH), lambda i, h: (0, h), w_res),         # W1 (bf16)
        spec((1, TH), lambda i, h: (0, h), w_res),         # b1
        spec((TH, D), lambda i, h: (h, 0), w_res),         # W2 (bf16)
        spec((1, D), lambda i, h: (0, 0), True),           # b2
    ]
    out_spec = pl.BlockSpec((TB, D), lambda i, h: (i, 0))
    return in_specs, out_spec


def residual_block(x, params, *, row_tile=None, max_weight_block_bytes=16 * 1024 * 1024):
    """Forward pass. `params` must come from prepare_params() (padded, bf16 weights)."""
    gamma, beta, w1, b1, w2, b2 = params
    B, D = x.shape
    assert w1.shape[0] == D and w2.shape[1] == D
    Hp = w1.shape[1]
    assert Hp % 128 == 0, "params must be prepared with prepare_params()"

    # Row tile: multiple of 8, split into >= 2 grid steps whenever B >= 16 so both
    # v7x TensorCores get work on the "parallel" axis.
    if row_tile is None:
        row_tile = _default_row_tile()
    TB = min(_round_up(row_tile, 8), _round_up(B, 8))
    if B >= 16:
        TB = min(TB, _round_up(pl.cdiv(B, 2), 8))
    n_rows = pl.cdiv(B, TB)

    # Hidden-dim tiling ("arbitrary" axis): per-step bf16 weight slice stays under
    # budget so large D/H still fits v7x VMEM; small models get a single step.
    per_unit = 4 * D * 128                                   # bf16 W1+W2 bytes per 128 cols
    th_units = max(1, min(Hp // 128, max_weight_block_bytes // max(per_unit, 1)))
    while (Hp // 128) % th_units:                            # TH must divide Hp exactly
        th_units -= 1
    TH = th_units * 128
    n_h = Hp // TH

    def run(single_buffer):
        wbuf = 1 if (single_buffer and n_h == 1) else 2
        cbuf = 1 if single_buffer else 2
        need = (wbuf * 2 * 2 * D * TH                        # W1 + W2 slices (bf16)
                + wbuf * 4 * TH                              # b1 slice
                + cbuf * 4 * 3 * D                           # gamma, beta, b2
                + 2 * 2 * TB * D * x.dtype.itemsize          # x + out tiles, double-buffered
                + TB * D * 6                                 # acc (f32) + xn (bf16) scratch
                + 2 * 4 * TB * TH)                           # h intermediate + headroom
        vmem_limit = min(max(int(1.3 * need), 16 * 1024 * 1024), _vmem_cap_bytes())

        cost = pl.CostEstimate(
            flops=4 * B * D * Hp,                            # two B x D x Hp matmuls
            transcendentals=B * Hp,                          # tanh in approximate GELU
            bytes_accessed=(2 * B * D * x.dtype.itemsize
                            + (1 if n_h == 1 else n_rows) * (4 * D * Hp + 4 * Hp)
                            + 4 * 3 * D),
        )

        in_specs, out_spec = _build_specs(TB, D, TH, n_h, single_buffer)
        return pl.pallas_call(
            _resblock_kernel,
            out_shape=jax.ShapeDtypeStruct((B, D), x.dtype),
            grid=(n_rows, n_h),
            in_specs=in_specs,
            out_specs=out_spec,
            scratch_shapes=[pltpu.VMEM((TB, D), jnp.float32),     # y accumulator
                            pltpu.VMEM((TB, D), jnp.bfloat16)],   # cached LayerNorm output
            compiler_params=pltpu.CompilerParams(
                dimension_semantics=("parallel", "arbitrary"),
                vmem_limit_bytes=vmem_limit),
            cost_estimate=cost,
        )(x, gamma, beta, w1, b1, w2, b2)

    try:
        return run(single_buffer=True)
    except Exception:
        # Older JAX without pl.Buffered pipeline_mode support: default buffering.
        return run(single_buffer=False)


# -------------------------------------------------------------------- init / reference
def init_params(key, in_dim, hidden_dim, dtype=jnp.float32):
    """PyTorch-default-style init; weights stored already transposed to [in, out]."""
    k1, k2, k3, k4 = jax.random.split(key, 4)
    bound1 = 1.0 / jnp.sqrt(in_dim)
    bound2 = 1.0 / jnp.sqrt(hidden_dim)
    gamma = jnp.ones((in_dim,), dtype)
    beta = jnp.zeros((in_dim,), dtype)
    w1 = jax.random.uniform(k1, (in_dim, hidden_dim), dtype, -bound1, bound1)
    b1 = jax.random.uniform(k2, (hidden_dim,), dtype, -bound1, bound1)
    w2 = jax.random.uniform(k3, (hidden_dim, in_dim), dtype, -bound2, bound2)
    b2 = jax.random.uniform(k4, (in_dim,), dtype, -bound2, bound2)
    return gamma, beta, w1, b1, w2, b2


def reference(x, gamma, beta, w1, b1, w2, b2):
    """Pure-JAX f32 reference of the PyTorch forward (eval mode, exact erf GELU)."""
    xf = x.astype(jnp.float32)
    mean = jnp.mean(xf, axis=-1, keepdims=True)
    var = jnp.mean((xf - mean) ** 2, axis=-1, keepdims=True)
    xn = (xf - mean) * jax.lax.rsqrt(var + 1e-5) * gamma + beta
    h = jax.nn.gelu(xn @ w1 + b1, approximate=False)
    y = h @ w2 + b2
    return (xf + y).astype(x.dtype)


if __name__ == "__main__":
    # Small demo shapes: hidden=192 pads to 256 once in prepare_params; batch splits
    # into 2 row tiles of 32 (both TensorCores busy on v7x).
    in_dim, hidden_dim, batch = 128, 192, 64

    key = jax.random.PRNGKey(0)
    kx, kp = jax.random.split(key)
    x = jax.random.normal(kx, (batch, in_dim), jnp.float32)
    raw_params = init_params(kp, in_dim, hidden_dim)
    prepared = prepare_params(*raw_params)     # one-time pad + bf16 cast (not per call)

    out = jax.block_until_ready(residual_block(x, prepared))
    ref = reference(x, *raw_params)
    assert out.shape == (batch, in_dim)
    # Tolerance loosened vs the pure-f32 reference: bf16 MXU operands + tanh GELU.
    err = float(jnp.max(jnp.abs(out - ref)))
    assert jnp.allclose(out, ref, atol=2e-2, rtol=2e-2), f"mismatch vs reference (max abs err {err})"

    # Also exercise the hidden-dim-tiled path (the large-model / v7x fallback):
    # a tiny weight-block budget forces TH=128, n_h=2 with the f32 accumulator.
    out_tiled = jax.block_until_ready(
        residual_block(x, prepared, max_weight_block_bytes=64 * 1024))
    err2 = float(jnp.max(jnp.abs(out_tiled - ref)))
    assert jnp.allclose(out_tiled, ref, atol=2e-2, rtol=2e-2), \
        f"mismatch (tiled path) vs reference (max abs err {err2})"

    print("KERNEL_OK")
</pallas_src>

<mosaic_0001>
module attributes {stable_mosaic.version = 11 : i64} {
  func.func @_resblock_kernel(%arg0: i32, %arg1: i32, %arg2: memref<32x128xf32, #tpu.memory_space<vmem>>, %arg3: memref<1x128xf32, #tpu.memory_space<vmem>>, %arg4: memref<1x128xf32, #tpu.memory_space<vmem>>, %arg5: memref<128x256xbf16, #tpu.memory_space<vmem>>, %arg6: memref<1x256xf32, #tpu.memory_space<vmem>>, %arg7: memref<256x128xbf16, #tpu.memory_space<vmem>>, %arg8: memref<1x128xf32, #tpu.memory_space<vmem>>, %arg9: memref<32x128xf32, #tpu.memory_space<vmem>>, %arg10: memref<32x128xf32, #tpu.memory_space<vmem>>, %arg11: memref<32x128xbf16, #tpu.memory_space<vmem>>) attributes {dimension_semantics = [#tpu.dimension_semantics<parallel>, #tpu.dimension_semantics<arbitrary>], iteration_bounds = array<i64: 2, 1>, scalar_prefetch = 0 : i64, scratch_operands = 2 : i64, tpu.core_type = #tpu.core_type<tc>, window_params = [{transform_indices = @transform_0, window_bounds = array<i64: 32, 128>}, {pipeline_mode = #tpu.pipeline_mode<synchronous>, transform_indices = @transform_1, window_bounds = array<i64: 1, 128>}, {pipeline_mode = #tpu.pipeline_mode<synchronous>, transform_indices = @transform_2, window_bounds = array<i64: 1, 128>}, {pipeline_mode = #tpu.pipeline_mode<synchronous>, transform_indices = @transform_3, window_bounds = array<i64: 128, 256>}, {pipeline_mode = #tpu.pipeline_mode<synchronous>, transform_indices = @transform_4, window_bounds = array<i64: 1, 256>}, {pipeline_mode = #tpu.pipeline_mode<synchronous>, transform_indices = @transform_5, window_bounds = array<i64: 256, 128>}, {pipeline_mode = #tpu.pipeline_mode<synchronous>, transform_indices = @transform_6, window_bounds = array<i64: 1, 128>}, {transform_indices = @transform_7, window_bounds = array<i64: 32, 128>}]} {
    %c0_i32 = arith.constant 0 : i32
    %0 = arith.cmpi eq, %arg1, %c0_i32 : i32
    %1 = arith.extui %0 : i1 to i32
    %c0_i32_0 = arith.constant 0 : i32
    %2 = arith.cmpi ne, %1, %c0_i32_0 : i32
    scf.if %2 {
      %c0_19 = arith.constant 0 : index
      %c0_20 = arith.constant 0 : index
      %31 = vector.load %arg2[%c0_19, %c0_20] : memref<32x128xf32, #tpu.memory_space<vmem>>, vector<32x128xf32>
      %cst_21 = arith.constant dense<0.000000e+00> : vector<32xf32>
      %32 = vector.multi_reduction <add>, %31, %cst_21 [1] : vector<32x128xf32> to vector<32xf32>
      %33 = vector.shape_cast %32 : vector<32xf32> to vector<32x1xf32>
      %cst_22 = arith.constant 1.280000e+02 : f32
      %34 = vector.broadcast %cst_22 : f32 to vector<32x1xf32>
      %35 = arith.divf %33, %34 : vector<32x1xf32>
      %36 = arith.mulf %31, %31 : vector<32x128xf32>
      %cst_23 = arith.constant dense<0.000000e+00> : vector<32xf32>
      %37 = vector.multi_reduction <add>, %36, %cst_23 [1] : vector<32x128xf32> to vector<32xf32>
      %38 = vector.shape_cast %37 : vector<32xf32> to vector<32x1xf32>
      %cst_24 = arith.constant 1.280000e+02 : f32
      %39 = vector.broadcast %cst_24 : f32 to vector<32x1xf32>
      %40 = arith.divf %38, %39 : vector<32x1xf32>
      %41 = arith.mulf %35, %35 : vector<32x1xf32>
      %42 = arith.subf %40, %41 : vector<32x1xf32>
      %43 = vector.broadcast %35 : vector<32x1xf32> to vector<32x128xf32>
      %44 = arith.subf %31, %43 : vector<32x128xf32>
      %cst_25 = arith.constant 9.99999974E-6 : f32
      %45 = vector.broadcast %cst_25 : f32 to vector<32x1xf32>
      %46 = arith.addf %42, %45 : vector<32x1xf32>
      %47 = math.rsqrt %46 : vector<32x1xf32>
      %48 = vector.broadcast %47 : vector<32x1xf32> to vector<32x128xf32>
      %49 = arith.mulf %44, %48 : vector<32x128xf32>
      %c0_26 = arith.constant 0 : index
      %c0_27 = arith.constant 0 : index
      %50 = vector.load %arg3[%c0_26, %c0_27] : memref<1x128xf32, #tpu.memory_space<vmem>>, vector<1x128xf32>
      %51 = vector.broadcast %50 : vector<1x128xf32> to vector<32x128xf32>
      %52 = arith.mulf %49, %51 : vector<32x128xf32>
      %c0_28 = arith.constant 0 : index
      %c0_29 = arith.constant 0 : index
      %53 = vector.load %arg4[%c0_28, %c0_29] : memref<1x128xf32, #tpu.memory_space<vmem>>, vector<1x128xf32>
      %54 = vector.broadcast %53 : vector<1x128xf32> to vector<32x128xf32>
      %55 = arith.addf %52, %54 : vector<32x128xf32>
      %56 = arith.truncf %55 : vector<32x128xf32> to vector<32x128xbf16>
      %c0_30 = arith.constant 0 : index
      %c0_31 = arith.constant 0 : index
      %57 = vector.load %arg11[%c0_30, %c0_31] : memref<32x128xbf16, #tpu.memory_space<vmem>>, vector<32x128xbf16>
      tpu.vector_store %arg11[%c0_30, %c0_31], %56 {strides = array<i32>} : memref<32x128xbf16, #tpu.memory_space<vmem>>, vector<32x128xbf16>,
      %cst_32 = arith.constant 0.000000e+00 : f32
      %58 = vector.broadcast %cst_32 : f32 to vector<32x128xf32>
      %c0_33 = arith.constant 0 : index
      %c0_34 = arith.constant 0 : index
      %59 = vector.load %arg10[%c0_33, %c0_34] : memref<32x128xf32, #tpu.memory_space<vmem>>, vector<32x128xf32>
      tpu.vector_store %arg10[%c0_33, %c0_34], %58 {strides = array<i32>} : memref<32x128xf32, #tpu.memory_space<vmem>>, vector<32x128xf32>,
    } else {
    }
    %c0 = arith.constant 0 : index
    %c0_1 = arith.constant 0 : index
    %3 = vector.load %arg11[%c0, %c0_1] : memref<32x128xbf16, #tpu.memory_space<vmem>>, vector<32x128xbf16>
    %c0_2 = arith.constant 0 : index
    %c0_3 = arith.constant 0 : index
    %4 = vector.load %arg5[%c0_2, %c0_3] : memref<128x256xbf16, #tpu.memory_space<vmem>>, vector<128x256xbf16>
    %cst = arith.constant dense<0.000000e+00> : vector<32x256xf32>
    %5 = tpu.matmul %3, %4, %cst {dimension_numbers = #tpu.dot_dimension_numbers<[1], [0], [0], [1], [0, 0, 1, 1], [], []>} : vector<32x128xbf16>, vector<128x256xbf16>, vector<32x256xf32> -> vector<32x256xf32>
    %c0_4 = arith.constant 0 : index
    %c0_5 = arith.constant 0 : index
    %6 = vector.load %arg6[%c0_4, %c0_5] : memref<1x256xf32, #tpu.memory_space<vmem>>, vector<1x256xf32>
    %7 = vector.broadcast %6 : vector<1x256xf32> to vector<32x256xf32>
    %8 = arith.addf %5, %7 : vector<32x256xf32>
    %9 = arith.mulf %8, %8 : vector<32x256xf32>
    %10 = arith.mulf %8, %9 : vector<32x256xf32>
    %cst_6 = arith.constant 4.471500e-02 : f32
    %11 = vector.broadcast %cst_6 : f32 to vector<32x256xf32>
    %12 = arith.mulf %11, %10 : vector<32x256xf32>
    %13 = arith.addf %8, %12 : vector<32x256xf32>
    %cst_7 = arith.constant 0.797884583 : f32
    %14 = vector.broadcast %cst_7 : f32 to vector<32x256xf32>
    %15 = arith.mulf %14, %13 : vector<32x256xf32>
    %16 = math.tanh %15 : vector<32x256xf32>
    %cst_8 = arith.constant 1.000000e+00 : f32
    %17 = vector.broadcast %cst_8 : f32 to vector<32x256xf32>
    %18 = arith.addf %17, %16 : vector<32x256xf32>
    %cst_9 = arith.constant 5.000000e-01 : f32
    %19 = vector.broadcast %cst_9 : f32 to vector<32x256xf32>
    %20 = arith.mulf %19, %18 : vector<32x256xf32>
    %21 = arith.mulf %8, %20 : vector<32x256xf32>
    %c0_10 = arith.constant 0 : index
    %c0_11 = arith.constant 0 : index
    %22 = vector.load %arg10[%c0_10, %c0_11] : memref<32x128xf32, #tpu.memory_space<vmem>>, vector<32x128xf32>
    %23 = arith.truncf %21 : vector<32x256xf32> to vector<32x256xbf16>
    %c0_12 = arith.constant 0 : index
    %c0_13 = arith.constant 0 : index
    %24 = vector.load %arg7[%c0_12, %c0_13] : memref<256x128xbf16, #tpu.memory_space<vmem>>, vector<256x128xbf16>
    %cst_14 = arith.constant dense<0.000000e+00> : vector<32x128xf32>
    %25 = tpu.matmul %23, %24, %cst_14 {dimension_numbers = #tpu.dot_dimension_numbers<[1], [0], [0], [1], [0, 0, 1, 1], [], []>} : vector<32x256xbf16>, vector<256x128xbf16>, vector<32x128xf32> -> vector<32x128xf32>
    %26 = arith.addf %22, %25 : vector<32x128xf32>
    %c0_15 = arith.constant 0 : index
    %c0_16 = arith.constant 0 : index
    %27 = vector.load %arg10[%c0_15, %c0_16] : memref<32x128xf32, #tpu.memory_space<vmem>>, vector<32x128xf32>
    tpu.vector_store %arg10[%c0_15, %c0_16], %26 {strides = array<i32>} : memref<32x128xf32, #tpu.memory_space<vmem>>, vector<32x128xf32>,
    %c0_i32_17 = arith.constant 0 : i32
    %28 = arith.cmpi eq, %arg1, %c0_i32_17 : i32
    %29 = arith.extui %28 : i1 to i32
    %c0_i32_18 = arith.constant 0 : i32
    %30 = arith.cmpi ne, %29, %c0_i32_18 : i32
    scf.if %30 {
      %c0_19 = arith.constant 0 : index
      %c0_20 = arith.constant 0 : index
      %31 = vector.load %arg2[%c0_19, %c0_20] : memref<32x128xf32, #tpu.memory_space<vmem>>, vector<32x128xf32>
      %c0_21 = arith.constant 0 : index
      %c0_22 = arith.constant 0 : index
      %32 = vector.load %arg10[%c0_21, %c0_22] : memref<32x128xf32, #tpu.memory_space<vmem>>, vector<32x128xf32>
      %33 = arith.addf %31, %32 : vector<32x128xf32>
      %c0_23 = arith.constant 0 : index
      %c0_24 = arith.constant 0 : index
      %34 = vector.load %arg8[%c0_23, %c0_24] : memref<1x128xf32, #tpu.memory_space<vmem>>, vector<1x128xf32>
      %35 = vector.broadcast %34 : vector<1x128xf32> to vector<32x128xf32>
      %36 = arith.addf %33, %35 : vector<32x128xf32>
      %c0_25 = arith.constant 0 : index
      %c0_26 = arith.constant 0 : index
      %37 = vector.load %arg9[%c0_25, %c0_26] : memref<32x128xf32, #tpu.memory_space<vmem>>, vector<32x128xf32>
      tpu.vector_store %arg9[%c0_25, %c0_26], %36 {strides = array<i32>} : memref<32x128xf32, #tpu.memory_space<vmem>>, vector<32x128xf32>,
    } else {
    }
    return
  }
  func.func @transform_0(%arg0: i32, %arg1: i32) -> (i32, i32) {
    %c0_i32 = arith.constant 0 : i32
    %c0_i32_0 = arith.constant 0 : i32
    return %arg0, %c0_i32 : i32, i32
  }
  func.func @transform_1(%arg0: i32, %arg1: i32) -> (i32, i32) {
    %c0_i32 = arith.constant 0 : i32
    %c0_i32_0 = arith.constant 0 : i32
    %c0_i32_1 = arith.constant 0 : i32
    return %c0_i32, %c0_i32_0 : i32, i32
  }
  func.func @transform_2(%arg0: i32, %arg1: i32) -> (i32, i32) {
    %c0_i32 = arith.constant 0 : i32
    %c0_i32_0 = arith.constant 0 : i32
    %c0_i32_1 = arith.constant 0 : i32
    return %c0_i32, %c0_i32_0 : i32, i32
  }
  func.func @transform_3(%arg0: i32, %arg1: i32) -> (i32, i32) {
    %c0_i32 = arith.constant 0 : i32
    %c0_i32_0 = arith.constant 0 : i32
    return %c0_i32, %arg1 : i32, i32
  }
  func.func @transform_4(%arg0: i32, %arg1: i32) -> (i32, i32) {
    %c0_i32 = arith.constant 0 : i32
    %c0_i32_0 = arith.constant 0 : i32
    return %c0_i32, %arg1 : i32, i32
  }
  func.func @transform_5(%arg0: i32, %arg1: i32) -> (i32, i32) {
    %c0_i32 = arith.constant 0 : i32
    %c0_i32_0 = arith.constant 0 : i32
    return %arg1, %c0_i32 : i32, i32
  }
  func.func @transform_6(%arg0: i32, %arg1: i32) -> (i32, i32) {
    %c0_i32 = arith.constant 0 : i32
    %c0_i32_0 = arith.constant 0 : i32
    %c0_i32_1 = arith.constant 0 : i32
    return %c0_i32, %c0_i32_0 : i32, i32
  }
  func.func @transform_7(%arg0: i32, %arg1: i32) -> (i32, i32) {
    %c0_i32 = arith.constant 0 : i32
    %c0_i32_0 = arith.constant 0 : i32
    return %arg0, %c0_i32 : i32, i32
  }
}

module attributes {stable_mosaic.version = 11 : i64} {
  func.func @_resblock_kernel(%arg0: i32, %arg1: i32, %arg2: memref<32x128xf32, #tpu.memory_space<vmem>>, %arg3: memref<1x128xf32, #tpu.memory_space<vmem>>, %arg4: memref<1x128xf32, #tpu.memory_space<vmem>>, %arg5: memref<128x256xbf16, #tpu.memory_space<vmem>>, %arg6: memref<1x256xf32, #tpu.memory_space<vmem>>, %arg7: memref<256x128xbf16, #tpu.memory_space<vmem>>, %arg8: memref<1x128xf32, #tpu.memory_space<vmem>>, %arg9: memref<32x128xf32, #tpu.memory_space<vmem>>, %arg10: memref<32x128xf32, #tpu.memory_space<vmem>>, %arg11: memref<32x128xbf16, #tpu.memory_space<vmem>>) attributes {dimension_semantics = [#tpu.dimension_semantics<parallel>, #tpu.dimension_semantics<arbitrary>], iteration_bounds = array<i64: 2, 1>, scalar_prefetch = 0 : i64, scratch_operands = 2 : i64, tpu.core_type = #tpu.core_type<tc>, window_params = [{transform_indices = @transform_0, window_bounds = array<i64: 32, 128>}, {pipeline_mode = #tpu.pipeline_mode<synchronous>, transform_indices = @transform_1, window_bounds = array<i64: 1, 128>}, {pipeline_mode = #tpu.pipeline_mode<synchronous>, transform_indices = @transform_2, window_bounds = array<i64: 1, 128>}, {transform_indices = @transform_3, window_bounds = array<i64: 128, 256>}, {transform_indices = @transform_4, window_bounds = array<i64: 1, 256>}, {transform_indices = @transform_5, window_bounds = array<i64: 256, 128>}, {pipeline_mode = #tpu.pipeline_mode<synchronous>, transform_indices = @transform_6, window_bounds = array<i64: 1, 128>}, {transform_indices = @transform_7, window_bounds = array<i64: 32, 128>}]} {
    %c0_i32 = arith.constant 0 : i32
    %0 = arith.cmpi eq, %arg1, %c0_i32 : i32
    %1 = arith.extui %0 : i1 to i32
    %c0_i32_0 = arith.constant 0 : i32
    %2 = arith.cmpi ne, %1, %c0_i32_0 : i32
    scf.if %2 {
      %c0_19 = arith.constant 0 : index
      %c0_20 = arith.constant 0 : index
      %31 = vector.load %arg2[%c0_19, %c0_20] : memref<32x128xf32, #tpu.memory_space<vmem>>, vector<32x128xf32>
      %cst_21 = arith.constant dense<0.000000e+00> : vector<32xf32>
      %32 = vector.multi_reduction <add>, %31, %cst_21 [1] : vector<32x128xf32> to vector<32xf32>
      %33 = vector.shape_cast %32 : vector<32xf32> to vector<32x1xf32>
      %cst_22 = arith.constant 1.280000e+02 : f32
      %34 = vector.broadcast %cst_22 : f32 to vector<32x1xf32>
      %35 = arith.divf %33, %34 : vector<32x1xf32>
      %36 = arith.mulf %31, %31 : vector<32x128xf32>
      %cst_23 = arith.constant dense<0.000000e+00> : vector<32xf32>
      %37 = vector.multi_reduction <add>, %36, %cst_23 [1] : vector<32x128xf32> to vector<32xf32>
      %38 = vector.shape_cast %37 : vector<32xf32> to vector<32x1xf32>
      %cst_24 = arith.constant 1.280000e+02 : f32
      %39 = vector.broadcast %cst_24 : f32 to vector<32x1xf32>
      %40 = arith.divf %38, %39 : vector<32x1xf32>
      %41 = arith.mulf %35, %35 : vector<32x1xf32>
      %42 = arith.subf %40, %41 : vector<32x1xf32>
      %43 = vector.broadcast %35 : vector<32x1xf32> to vector<32x128xf32>
      %44 = arith.subf %31, %43 : vector<32x128xf32>
      %cst_25 = arith.constant 9.99999974E-6 : f32
      %45 = vector.broadcast %cst_25 : f32 to vector<32x1xf32>
      %46 = arith.addf %42, %45 : vector<32x1xf32>
      %47 = math.rsqrt %46 : vector<32x1xf32>
      %48 = vector.broadcast %47 : vector<32x1xf32> to vector<32x128xf32>
      %49 = arith.mulf %44, %48 : vector<32x128xf32>
      %c0_26 = arith.constant 0 : index
      %c0_27 = arith.constant 0 : index
      %50 = vector.load %arg3[%c0_26, %c0_27] : memref<1x128xf32, #tpu.memory_space<vmem>>, vector<1x128xf32>
      %51 = vector.broadcast %50 : vector<1x128xf32> to vector<32x128xf32>
      %52 = arith.mulf %49, %51 : vector<32x128xf32>
      %c0_28 = arith.constant 0 : index
      %c0_29 = arith.constant 0 : index
      %53 = vector.load %arg4[%c0_28, %c0_29] : memref<1x128xf32, #tpu.memory_space<vmem>>, vector<1x128xf32>
      %54 = vector.broadcast %53 : vector<1x128xf32> to vector<32x128xf32>
      %55 = arith.addf %52, %54 : vector<32x128xf32>
      %56 = arith.truncf %55 : vector<32x128xf32> to vector<32x128xbf16>
      %c0_30 = arith.constant 0 : index
      %c0_31 = arith.constant 0 : index
      %57 = vector.load %arg11[%c0_30, %c0_31] : memref<32x128xbf16, #tpu.memory_space<vmem>>, vector<32x128xbf16>
      tpu.vector_store %arg11[%c0_30, %c0_31], %56 {strides = array<i32>} : memref<32x128xbf16, #tpu.memory_space<vmem>>, vector<32x128xbf16>,
      %cst_32 = arith.constant 0.000000e+00 : f32
      %58 = vector.broadcast %cst_32 : f32 to vector<32x128xf32>
      %c0_33 = arith.constant 0 : index
      %c0_34 = arith.constant 0 : index
      %59 = vector.load %arg10[%c0_33, %c0_34] : memref<32x128xf32, #tpu.memory_space<vmem>>, vector<32x128xf32>
      tpu.vector_store %arg10[%c0_33, %c0_34], %58 {strides = array<i32>} : memref<32x128xf32, #tpu.memory_space<vmem>>, vector<32x128xf32>,
    } else {
    }
    %c0 = arith.constant 0 : index
    %c0_1 = arith.constant 0 : index
    %3 = vector.load %arg11[%c0, %c0_1] : memref<32x128xbf16, #tpu.memory_space<vmem>>, vector<32x128xbf16>
    %c0_2 = arith.constant 0 : index
    %c0_3 = arith.constant 0 : index
    %4 = vector.load %arg5[%c0_2, %c0_3] : memref<128x256xbf16, #tpu.memory_space<vmem>>, vector<128x256xbf16>
    %cst = arith.constant dense<0.000000e+00> : vector<32x256xf32>
    %5 = tpu.matmul %3, %4, %cst {dimension_numbers = #tpu.dot_dimension_numbers<[1], [0], [0], [1], [0, 0, 1, 1], [], []>} : vector<32x128xbf16>, vector<128x256xbf16>, vector<32x256xf32> -> vector<32x256xf32>
    %c0_4 = arith.constant 0 : index
    %c0_5 = arith.constant 0 : index
    %6 = vector.load %arg6[%c0_4, %c0_5] : memref<1x256xf32, #tpu.memory_space<vmem>>, vector<1x256xf32>
    %7 = vector.broadcast %6 : vector<1x256xf32> to vector<32x256xf32>
    %8 = arith.addf %5, %7 : vector<32x256xf32>
    %9 = arith.mulf %8, %8 : vector<32x256xf32>
    %10 = arith.mulf %8, %9 : vector<32x256xf32>
    %cst_6 = arith.constant 4.471500e-02 : f32
    %11 = vector.broadcast %cst_6 : f32 to vector<32x256xf32>
    %12 = arith.mulf %11, %10 : vector<32x256xf32>
    %13 = arith.addf %8, %12 : vector<32x256xf32>
    %cst_7 = arith.constant 0.797884583 : f32
    %14 = vector.broadcast %cst_7 : f32 to vector<32x256xf32>
    %15 = arith.mulf %14, %13 : vector<32x256xf32>
    %16 = math.tanh %15 : vector<32x256xf32>
    %cst_8 = arith.constant 1.000000e+00 : f32
    %17 = vector.broadcast %cst_8 : f32 to vector<32x256xf32>
    %18 = arith.addf %17, %16 : vector<32x256xf32>
    %cst_9 = arith.constant 5.000000e-01 : f32
    %19 = vector.broadcast %cst_9 : f32 to vector<32x256xf32>
    %20 = arith.mulf %19, %18 : vector<32x256xf32>
    %21 = arith.mulf %8, %20 : vector<32x256xf32>
    %c0_10 = arith.constant 0 : index
    %c0_11 = arith.constant 0 : index
    %22 = vector.load %arg10[%c0_10, %c0_11] : memref<32x128xf32, #tpu.memory_space<vmem>>, vector<32x128xf32>
    %23 = arith.truncf %21 : vector<32x256xf32> to vector<32x256xbf16>
    %c0_12 = arith.constant 0 : index
    %c0_13 = arith.constant 0 : index
    %24 = vector.load %arg7[%c0_12, %c0_13] : memref<256x128xbf16, #tpu.memory_space<vmem>>, vector<256x128xbf16>
    %cst_14 = arith.constant dense<0.000000e+00> : vector<32x128xf32>
    %25 = tpu.matmul %23, %24, %cst_14 {dimension_numbers = #tpu.dot_dimension_numbers<[1], [0], [0], [1], [0, 0, 1, 1], [], []>} : vector<32x256xbf16>, vector<256x128xbf16>, vector<32x128xf32> -> vector<32x128xf32>
    %26 = arith.addf %22, %25 : vector<32x128xf32>
    %c0_15 = arith.constant 0 : index
    %c0_16 = arith.constant 0 : index
    %27 = vector.load %arg10[%c0_15, %c0_16] : memref<32x128xf32, #tpu.memory_space<vmem>>, vector<32x128xf32>
    tpu.vector_store %arg10[%c0_15, %c0_16], %26 {strides = array<i32>} : memref<32x128xf32, #tpu.memory_space<vmem>>, vector<32x128xf32>,
    %c0_i32_17 = arith.constant 0 : i32
    %28 = arith.cmpi eq, %arg1, %c0_i32_17 : i32
    %29 = arith.extui %28 : i1 to i32
    %c0_i32_18 = arith.constant 0 : i32
    %30 = arith.cmpi ne, %29, %c0_i32_18 : i32
    scf.if %30 {
      %c0_19 = arith.constant 0 : index
      %c0_20 = arith.constant 0 : index
      %31 = vector.load %arg2[%c0_19, %c0_20] : memref<32x128xf32, #tpu.memory_space<vmem>>, vector<32x128xf32>
      %c0_21 = arith.constant 0 : index
      %c0_22 = arith.constant 0 : index
      %32 = vector.load %arg10[%c0_21, %c0_22] : memref<32x128xf32, #tpu.memory_space<vmem>>, vector<32x128xf32>
      %33 = arith.addf %31, %32 : vector<32x128xf32>
      %c0_23 = arith.constant 0 : index
      %c0_24 = arith.constant 0 : index
      %34 = vector.load %arg8[%c0_23, %c0_24] : memref<1x128xf32, #tpu.memory_space<vmem>>, vector<1x128xf32>
      %35 = vector.broadcast %34 : vector<1x128xf32> to vector<32x128xf32>
      %36 = arith.addf %33, %35 : vector<32x128xf32>
      %c0_25 = arith.constant 0 : index
      %c0_26 = arith.constant 0 : index
      %37 = vector.load %arg9[%c0_25, %c0_26] : memref<32x128xf32, #tpu.memory_space<vmem>>, vector<32x128xf32>
      tpu.vector_store %arg9[%c0_25, %c0_26], %36 {strides = array<i32>} : memref<32x128xf32, #tpu.memory_space<vmem>>, vector<32x128xf32>,
    } else {
    }
    return
  }
  func.func @transform_0(%arg0: i32, %arg1: i32) -> (i32, i32) {
    %c0_i32 = arith.constant 0 : i32
    %c0_i32_0 = arith.constant 0 : i32
    return %arg0, %c0_i32 : i32, i32
  }
  func.func @transform_1(%arg0: i32, %arg1: i32) -> (i32, i32) {
    %c0_i32 = arith.constant 0 : i32
    %c0_i32_0 = arith.constant 0 : i32
    %c0_i32_1 = arith.constant 0 : i32
    return %c0_i32, %c0_i32_0 : i32, i32
  }
  func.func @transform_2(%arg0: i32, %arg1: i32) -> (i32, i32) {
    %c0_i32 = arith.constant 0 : i32
    %c0_i32_0 = arith.constant 0 : i32
    %c0_i32_1 = arith.constant 0 : i32
    return %c0_i32, %c0_i32_0 : i32, i32
  }
  func.func @transform_3(%arg0: i32, %arg1: i32) -> (i32, i32) {
    %c0_i32 = arith.constant 0 : i32
    %c0_i32_0 = arith.constant 0 : i32
    return %c0_i32, %arg1 : i32, i32
  }
  func.func @transform_4(%arg0: i32, %arg1: i32) -> (i32, i32) {
    %c0_i32 = arith.constant 0 : i32
    %c0_i32_0 = arith.constant 0 : i32
    return %c0_i32, %arg1 : i32, i32
  }
  func.func @transform_5(%arg0: i32, %arg1: i32) -> (i32, i32) {
    %c0_i32 = arith.constant 0 : i32
    %c0_i32_0 = arith.constant 0 : i32
    return %arg1, %c0_i32 : i32, i32
  }
  func.func @transform_6(%arg0: i32, %arg1: i32) -> (i32, i32) {
    %c0_i32 = arith.constant 0 : i32
    %c0_i32_0 = arith.constant 0 : i32
    %c0_i32_1 = arith.constant 0 : i32
    return %c0_i32, %c0_i32_0 : i32, i32
  }
  func.func @transform_7(%arg0: i32, %arg1: i32) -> (i32, i32) {
    %c0_i32 = arith.constant 0 : i32
    %c0_i32_0 = arith.constant 0 : i32
    return %arg0, %c0_i32 : i32, i32
  }
}

</mosaic_0001>

<llo_original>
// kernel: tpu_custom_call.1
$region0: #{tpu_custom_call.1}
  #allocation0 [shape = 'u32[]', space=smem, size = 0x4, offset = 0x4, fixed_abs, tag = 'smem constant byte address 0x4 - core index']
  #allocation1 [shape = 'u32[144,128]{1,0:T(1,128)}', space=vmem, size = 0x12000, scoped, tag = 'internal scratch']
  #allocation2 [shape = 'f32[32,128]{1,0:T(8,128)}', space=vmem, size = 0x4000, scoped, tag = 'scratch operand']
  #allocation3 [shape = 'bf16[32,128]{1,0:T(16,128)(2,1)}', space=vmem, size = 0x2000, scoped, tag = 'scratch operand']
  %s0 = inlined_call_operand.hbm [shape: f32[64,128], index: 0, kind: input, shape index: {}]
  %s1 = inlined_call_operand.vmem [shape: f32[1,128], index: 1, kind: input, shape index: {}]
  %s2 = inlined_call_operand.vmem [shape: f32[1,128], index: 2, kind: input, shape index: {}]
  %s3 = inlined_call_operand.hbm [shape: bf16[128,256], index: 3, kind: input, shape index: {}]
  %s4 = inlined_call_operand.vmem [shape: f32[1,256], index: 4, kind: input, shape index: {}]
  %s5 = inlined_call_operand.hbm [shape: bf16[256,128], index: 5, kind: input, shape index: {}]
  %s6 = inlined_call_operand.vmem [shape: f32[1,128], index: 6, kind: input, shape index: {}]
  %s7 = inlined_call_operand.hbm [shape: f32[64,128], index: 7, kind: output, shape index: {}]
  %s8 = sld [smem:[#allocation0]]
  $region81: #{tpu_custom_call.1} parent=0
    _
  %s10 = ssub.s32 1, %s8
  %s11 = scalar_select 0, %s10, %s8
  $region1: #{tpu_custom_call.1} parent=0
    #allocation4 [shape = 'u8[32768]{0}', space=vmem, size = 0x8000, scoped, tag = 'input window, operand 0']
    #allocation5 [shape = 's32[2]{0}', space=sflag, size = 0x8, scoped, tag = 'scoped memory for tpu_custom_call.1']
    #allocation6 [shape = 's32[2]{0}', space=sflag, size = 0x8, scoped, tag = 'scoped memory for tpu_custom_call.1']
    #allocation7 [shape = 'u8[65536]{0}', space=vmem, size = 0x10000, scoped, tag = 'input window, operand 3, single buffered']
    #allocation8 [shape = 's32[1]{0}', space=sflag, size = 0x4, scoped, tag = 'scoped memory for tpu_custom_call.1']
    #allocation9 [shape = 'u8[65536]{0}', space=vmem, size = 0x10000, scoped, tag = 'input window, operand 5, single buffered']
    #allocation10 [shape = 'u8[32768]{0}', space=vmem, size = 0x8000, scoped, tag = 'output window, operand 0']
    %12 = vsyncpa [#allocation5], 0
    %s13 = scalar_lea.sflag [#allocation5], 1
    %14 = vsyncpa %s13, 0
    %15 = vsyncpa [#allocation8], 0
    %16 = vsyncpa [#allocation6], 0
    %s17 = scalar_lea.sflag [#allocation6], 1
    %18 = vsyncpa %s17, 0
    loop: start=0, step=1, limit=4
    $region2: #{tpu_custom_call.1} parent=1 // loop_pre_header
      _
    $region3: #{tpu_custom_call.1} parent=1 // loop_header
      %s20 = sphi 0, %s24
      %p21 = scmp.ge.s32.totalorder %s20, 4
      %s27 = sphi 0, %s39
      %s28 = sphi 0, %s35
      %s29 = sphi 0, %s27
      %s30 = sphi 0, %s28
      %s31 = sphi 0, %s29
      %s32 = sphi 0, %s30
      %s42 = sphi 0, %s44
      %s45 = sphi 0, %s42
      %s46 = sphi 0, %s45
      %s62 = sphi 0, %s46
      %s66 = sphi 0, %s66
      %s68 = sphi 0, %s66
      %s69 = sphi 0, %s68
      %s83 = sphi 0, %s69
      %s87 = sphi 0, %s87
      %s89 = sphi 0, %s87
      %s90 = sphi 0, %s89
      %s104 = sphi 0, %s90
      %s110 = sphi 0, %s112
      %s113 = sphi 0, %s110
      %s114 = sphi 0, %s113
      %s130 = sphi 0, %s114
      %s136 = sphi 0, %s138
      %s139 = sphi 0, %s136
      %s140 = sphi 0, %s139
      %s156 = sphi 0, %s140
      %s162 = sphi 0, %s164
      %s165 = sphi 0, %s162
      %s166 = sphi 0, %s165
      %s182 = sphi 0, %s166
      %s186 = sphi 0, %s186
      %s188 = sphi 0, %s186
      %s189 = sphi 0, %s188
      %s203 = sphi 0, %s189
      %s209 = sphi 0, %s211
      %s212 = sphi 0, %s209
      %s213 = sphi 0, %s212
      %s229 = sphi 0, %s213
    $region4: #{tpu_custom_call.1} parent=1 // loop_header_branch
      %23 = sbr.rel (%p21) target = $region8
    $region5: #{tpu_custom_call.1} parent=1 // loop_body
      %s25 = ssub.s32 %s20, 1
      %s26 = ssub.s32 %s20, 2
      %s33 = sadd.s32 1, %s28
      %p34 = scmp.ge.s32.totalorder %s33, 1
      %s35 = scalar_select %p34, 0, %s33
      %s36 = sadd.s32 1, %s27
      %s37 = scalar_select %p34, %s36, %s27
      %p38 = scmp.ge.s32.totalorder %s37, 2
      %s39 = scalar_select %p38, 0, %s37
      %s40 = ssub.s32 %s27, %s39
      %p41 = scmp.eq.s32.totalorder %s40, 0
      %s43 = sadd.s32 %s42, 1
      %s44 = scalar_select %p41, %s42, %s43
      %p47 = pneg %p41
      %p48 = scmp.eq.s32.totalorder %s20, 1
      %p49 = por %p47, %p48
      %p50 = scmp.ne.s32.totalorder %s42, %s45
      %p51 = scmp.eq.s32.totalorder %s20, 0
      %p52 = por %p50, %p51
      %p53 = scmp.ne.s32.totalorder %s42, %s45
      %p54 = scmp.eq.s32.totalorder %s25, 1
      %p55 = por %p53, %p54
      %p56 = scmp.ne.s32.totalorder %s45, %s46
      %p57 = scmp.eq.s32.totalorder %s25, 0
      %p58 = por %p56, %p57
      %p59 = scmp.ne.s32.totalorder %s45, %s46
      %p60 = scmp.eq.s32.totalorder %s26, 1
      %p61 = por %p59, %p60
      %p63 = scmp.ne.s32.totalorder %s46, %s62
      %p64 = scmp.eq.s32.totalorder %s26, 0
      %p65 = por %p63, %p64
      %s67 = sadd.s32 %s66, 1
      %p70 = scmp.eq.s32.totalorder %s20, 1
      %p71 = scmp.ne.s32.totalorder %s66, %s68
      %p72 = scmp.eq.s32.totalorder %s20, 0
      %p73 = por %p71, %p72
      %p74 = scmp.ne.s32.totalorder %s66, %s68
      %p75 = scmp.eq.s32.totalorder %s25, 1
      %p76 = por %p74, %p75
      %p77 = scmp.ne.s32.totalorder %s68, %s69
      %p78 = scmp.eq.s32.totalorder %s25, 0
      %p79 = por %p77, %p78
      %p80 = scmp.ne.s32.totalorder %s68, %s69
      %p81 = scmp.eq.s32.totalorder %s26, 1
      %p82 = por %p80, %p81
      %p84 = scmp.ne.s32.totalorder %s69, %s83
      %p85 = scmp.eq.s32.totalorder %s26, 0
      %p86 = por %p84, %p85
      %s88 = sadd.s32 %s87, 1
      %p91 = scmp.eq.s32.totalorder %s20, 1
      %p92 = scmp.ne.s32.totalorder %s87, %s89
      %p93 = scmp.eq.s32.totalorder %s20, 0
      %p94 = por %p92, %p93
      %p95 = scmp.ne.s32.totalorder %s87, %s89
      %p96 = scmp.eq.s32.totalorder %s25, 1
      %p97 = por %p95, %p96
      %p98 = scmp.ne.s32.totalorder %s89, %s90
      %p99 = scmp.eq.s32.totalorder %s25, 0
      %p100 = por %p98, %p99
      %p101 = scmp.ne.s32.totalorder %s89, %s90
      %p102 = scmp.eq.s32.totalorder %s26, 1
      %p103 = por %p101, %p102
      %p105 = scmp.ne.s32.totalorder %s90, %s104
      %p106 = scmp.eq.s32.totalorder %s26, 0
      %p107 = por %p105, %p106
      %s108 = ssub.s32 %s28, %s35
      %p109 = scmp.eq.s32.totalorder %s108, 0
      %s111 = sadd.s32 %s110, 1
      %s112 = scalar_select %p109, %s110, %s111
      %p115 = pneg %p109
      %p116 = scmp.eq.s32.totalorder %s20, 1
      %p117 = por %p115, %p116
      %p118 = scmp.ne.s32.totalorder %s110, %s113
      %p119 = scmp.eq.s32.totalorder %s20, 0
      %p120 = por %p118, %p119
      %p121 = scmp.ne.s32.totalorder %s110, %s113
      %p122 = scmp.eq.s32.totalorder %s25, 1
      %p123 = por %p121, %p122
      %p124 = scmp.ne.s32.totalorder %s113, %s114
      %p125 = scmp.eq.s32.totalorder %s25, 0
      %p126 = por %p124, %p125
      %p127 = scmp.ne.s32.totalorder %s113, %s114
      %p128 = scmp.eq.s32.totalorder %s26, 1
      %p129 = por %p127, %p128
      %p131 = scmp.ne.s32.totalorder %s114, %s130
      %p132 = scmp.eq.s32.totalorder %s26, 0
      %p133 = por %p131, %p132
      %s134 = ssub.s32 %s28, %s35
      %p135 = scmp.eq.s32.totalorder %s134, 0
      %s137 = sadd.s32 %s136, 1
      %s138 = scalar_select %p135, %s136, %s137
      %p141 = pneg %p135
      %p142 = scmp.eq.s32.totalorder %s20, 1
      %p143 = por %p141, %p142
      %p144 = scmp.ne.s32.totalorder %s136, %s139
      %p145 = scmp.eq.s32.totalorder %s20, 0
      %p146 = por %p144, %p145
      %p147 = scmp.ne.s32.totalorder %s136, %s139
      %p148 = scmp.eq.s32.totalorder %s25, 1
      %p149 = por %p147, %p148
      %p150 = scmp.ne.s32.totalorder %s139, %s140
      %p151 = scmp.eq.s32.totalorder %s25, 0
      %p152 = por %p150, %p151
      %p153 = scmp.ne.s32.totalorder %s139, %s140
      %p154 = scmp.eq.s32.totalorder %s26, 1
      %p155 = por %p153, %p154
      %p157 = scmp.ne.s32.totalorder %s140, %s156
      %p158 = scmp.eq.s32.totalorder %s26, 0
      %p159 = por %p157, %p158
      %s160 = ssub.s32 %s28, %s35
      %p161 = scmp.eq.s32.totalorder %s160, 0
      %s163 = sadd.s32 %s162, 1
      %s164 = scalar_select %p161, %s162, %s163
      %p167 = pneg %p161
      %p168 = scmp.eq.s32.totalorder %s20, 1
      %p169 = por %p167, %p168
      %p170 = scmp.ne.s32.totalorder %s162, %s165
      %p171 = scmp.eq.s32.totalorder %s20, 0
      %p172 = por %p170, %p171
      %p173 = scmp.ne.s32.totalorder %s162, %s165
      %p174 = scmp.eq.s32.totalorder %s25, 1
      %p175 = por %p173, %p174
      %p176 = scmp.ne.s32.totalorder %s165, %s166
      %p177 = scmp.eq.s32.totalorder %s25, 0
      %p178 = por %p176, %p177
      %p179 = scmp.ne.s32.totalorder %s165, %s166
      %p180 = scmp.eq.s32.totalorder %s26, 1
      %p181 = por %p179, %p180
      %p183 = scmp.ne.s32.totalorder %s166, %s182
      %p184 = scmp.eq.s32.totalorder %s26, 0
      %p185 = por %p183, %p184
      %s187 = sadd.s32 %s186, 1
      %p190 = scmp.eq.s32.totalorder %s20, 1
      %p191 = scmp.ne.s32.totalorder %s186, %s188
      %p192 = scmp.eq.s32.totalorder %s20, 0
      %p193 = por %p191, %p192
      %p194 = scmp.ne.s32.totalorder %s186, %s188
      %p195 = scmp.eq.s32.totalorder %s25, 1
      %p196 = por %p194, %p195
      %p197 = scmp.ne.s32.totalorder %s188, %s189
      %p198 = scmp.eq.s32.totalorder %s25, 0
      %p199 = por %p197, %p198
      %p200 = scmp.ne.s32.totalorder %s188, %s189
      %p201 = scmp.eq.s32.totalorder %s26, 1
      %p202 = por %p200, %p201
      %p204 = scmp.ne.s32.totalorder %s189, %s203
      %p205 = scmp.eq.s32.totalorder %s26, 0
      %p206 = por %p204, %p205
      %s207 = ssub.s32 %s27, %s39
      %p208 = scmp.eq.s32.totalorder %s207, 0
      %s210 = sadd.s32 %s209, 1
      %s211 = scalar_select %p208, %s209, %s210
      %p214 = pneg %p208
      %p215 = scmp.eq.s32.totalorder %s20, 1
      %p216 = por %p214, %p215
      %p217 = scmp.ne.s32.totalorder %s209, %s212
      %p218 = scmp.eq.s32.totalorder %s20, 0
      %p219 = por %p217, %p218
      %p220 = scmp.ne.s32.totalorder %s209, %s212
      %p221 = scmp.eq.s32.totalorder %s25, 1
      %p222 = por %p220, %p221
      %p223 = scmp.ne.s32.totalorder %s212, %s213
      %p224 = scmp.eq.s32.totalorder %s25, 0
      %p225 = por %p223, %p224
      %p226 = scmp.ne.s32.totalorder %s212, %s213
      %p227 = scmp.eq.s32.totalorder %s26, 1
      %p228 = por %p226, %p227
      %p230 = scmp.ne.s32.totalorder %s213, %s229
      %p231 = scmp.eq.s32.totalorder %s26, 0
      %p232 = por %p230, %p231
      %p233 = scmp.le.s32.totalorder 1, %s20
      %p234 = scmp.lt.s32.totalorder %s20, 3
      %p235 = pnand %p233, %p234
      %p236 = pneg %p235
      // Predicated region
      $region9: #{tpu_custom_call.1} parent=5 // pred_check
        _
      $region10: #{tpu_custom_call.1} parent=5 // pred_check_branch
        %238 = sbr.rel (%p235) target = $region12
      $region11: #{tpu_custom_call.1} parent=5 // pred_region
        %s239 = ssub.s32 %s20, 1
        // Predicated region
        $region13: #{tpu_custom_call.1} parent=11 // pred_check
          %p240 = pneg %p79
        $region14: #{tpu_custom_call.1} parent=11 // pred_check_branch
          %242 = sbr.rel (%p240) target = $region16
        $region15: #{tpu_custom_call.1} parent=11 // pred_region
          _
        $region16: #{tpu_custom_call.1} parent=11 // pred_fallthru
          _
        // Predicated region
        $region17: #{tpu_custom_call.1} parent=11 // pred_check
          %p243 = pneg %p100
        $region18: #{tpu_custom_call.1} parent=11 // pred_check_branch
          %245 = sbr.rel (%p243) target = $region20
        $region19: #{tpu_custom_call.1} parent=11 // pred_region
          _
        $region20: #{tpu_custom_call.1} parent=11 // pred_fallthru
          _
        // Predicated region
        $region21: #{tpu_custom_call.1} parent=11 // pred_check
          %p246 = pneg %p126
        $region22: #{tpu_custom_call.1} parent=11 // pred_check_branch
          %248 = sbr.rel (%p246) target = $region24
        $region23: #{tpu_custom_call.1} parent=11 // pred_region
          %s249 = smul.u32 2, %s30
          %s251 = ssub.s32 2048, 2048
          %252 = vsyncadd [#allocation8], %s251
          %s253 = smul.addr %s249, 64
          %s254 = scalar_lea.hbm %s3, %s253
          %s255 = sshll.u32 [#allocation7], 4
          %s256 = int_to_ptr.vmem [resolvable:$true] %s255
          %261 = dma.hbm_to_vmem [thread:$0]  %s254, 2048, %s256, [#allocation8], 128, 128, 8
        $region24: #{tpu_custom_call.1} parent=11 // pred_fallthru
          _
        // Predicated region
        $region25: #{tpu_custom_call.1} parent=11 // pred_check
          %p262 = pneg %p152
        $region26: #{tpu_custom_call.1} parent=11 // pred_check_branch
          %264 = sbr.rel (%p262) target = $region28
        $region27: #{tpu_custom_call.1} parent=11 // pred_region
          %s265 = smul.u32 2, %s30
          %p266 = scmp.lt.s32.totalorder %s265, 1
          %s267 = scalar_select %p266, %s265, 1
          %s268 = scalar_lea.vmem %s4, %s267
          %s269 = smul.u32 2, %s30
        $region28: #{tpu_custom_call.1} parent=11 // pred_fallthru
          _
        // Predicated region
        $region29: #{tpu_custom_call.1} parent=11 // pred_check
          %p270 = pneg %p178
        $region30: #{tpu_custom_call.1} parent=11 // pred_check_branch
          %272 = sbr.rel (%p270) target = $region32
        $region31: #{tpu_custom_call.1} parent=11 // pred_region
          %s273 = smul.u32 32, %s30
          %s275 = ssub.s32 2048, 2048
          %276 = vsyncadd [#allocation8], %s275
          %s277 = smul.addr %s273, 64
          %s278 = scalar_lea.hbm %s5, %s277
          %s279 = sshll.u32 [#allocation9], 4
          %s280 = int_to_ptr.vmem [resolvable:$true] %s279
          %285 = dma.hbm_to_vmem [thread:$0]  %s278, 2048, %s280, [#allocation8], 64, 64, 4
        $region32: #{tpu_custom_call.1} parent=11 // pred_fallthru
          _
        // Predicated region
        $region33: #{tpu_custom_call.1} parent=11 // pred_check
          %p286 = pneg %p199
        $region34: #{tpu_custom_call.1} parent=11 // pred_check_branch
          %288 = sbr.rel (%p286) target = $region36
        $region35: #{tpu_custom_call.1} parent=11 // pred_region
          _
        $region36: #{tpu_custom_call.1} parent=11 // pred_fallthru
          _
      $region12: #{tpu_custom_call.1} parent=5 // pred_fallthru
        _
      %p289 = scmp.lt.s32.totalorder %s20, 2
      // Predicated region
      $region37: #{tpu_custom_call.1} parent=5 // pred_check
        %p290 = pneg %p289
      $region38: #{tpu_custom_call.1} parent=5 // pred_check_branch
        %292 = sbr.rel (%p290) target = $region40
      $region39: #{tpu_custom_call.1} parent=5 // pred_region
        // Predicated region
        $region41: #{tpu_custom_call.1} parent=39 // pred_check
          %p293 = pneg %p52
        $region42: #{tpu_custom_call.1} parent=39 // pred_check_branch
          %295 = sbr.rel (%p293) target = $region44
        $region43: #{tpu_custom_call.1} parent=39 // pred_region
          %s296 = sand.u32 %s42, 1
          %s297 = scalar_lea.sflag [#allocation5], %s296
          %s298 = sand.u32 %s42, 1
          %s299 = smul.addr %s298, 32
          %s300 = scalar_lea.vmem [#allocation4], %s299
          %s301 = smul.u32 4, %s27
          %s303 = ssub.s32 512, 512
          %304 = vsyncadd %s297, %s303
          %s305 = smul.addr %s301, 128
          %s306 = scalar_lea.hbm %s0, %s305
          %s307 = sshll.u32 %s300, 4
          %s308 = int_to_ptr.vmem [resolvable:$true] %s307
          %313 = dma.hbm_to_vmem [thread:$0]  %s306, 512, %s308, %s297, 128, 128, 8
        $region44: #{tpu_custom_call.1} parent=39 // pred_fallthru
          _
      $region40: #{tpu_custom_call.1} parent=5 // pred_fallthru
        _
      %p314 = scmp.le.s32.totalorder 1, %s20
      %p315 = scmp.lt.s32.totalorder %s20, 3
      %p316 = pnand %p314, %p315
      %p317 = pneg %p316
      // Predicated region
      $region45: #{tpu_custom_call.1} parent=5 // pred_check
        _
      $region46: #{tpu_custom_call.1} parent=5 // pred_check_branch
        %319 = sbr.rel (%p316) target = $region48
      $region47: #{tpu_custom_call.1} parent=5 // pred_region
        %s320 = ssub.s32 %s20, 1
        %s321 = sand.u32 %s45, 1
        %s322 = scalar_lea.sflag [#allocation5], %s321
        %s323 = sand.u32 %s45, 1
        %s324 = smul.addr %s323, 32
        %s325 = scalar_lea.vmem [#allocation4], %s324
        // Predicated region
        $region49: #{tpu_custom_call.1} parent=47 // pred_check
          %p326 = pneg %p58
        $region50: #{tpu_custom_call.1} parent=47 // pred_check_branch
          %328 = sbr.rel (%p326) target = $region52
        $region51: #{tpu_custom_call.1} parent=47 // pred_region
          %329 = dma.done %s322, 512
        $region52: #{tpu_custom_call.1} parent=47 // pred_fallthru
          _
        // Predicated region
        $region53: #{tpu_custom_call.1} parent=47 // pred_check
          %p330 = pneg %p126
        $region54: #{tpu_custom_call.1} parent=47 // pred_check_branch
          %332 = sbr.rel (%p330) target = $region56
        $region55: #{tpu_custom_call.1} parent=47 // pred_region
          %333 = dma.done [#allocation8], 2048
        $region56: #{tpu_custom_call.1} parent=47 // pred_fallthru
          _
        // Predicated region
        $region57: #{tpu_custom_call.1} parent=47 // pred_check
          %p334 = pneg %p178
        $region58: #{tpu_custom_call.1} parent=47 // pred_check_branch
          %336 = sbr.rel (%p334) target = $region60
        $region59: #{tpu_custom_call.1} parent=47 // pred_region
          %337 = dma.done [#allocation8], 2048
        $region60: #{tpu_custom_call.1} parent=47 // pred_fallthru
          _
        %s338 = sand.u32 %s45, 1
        %s339 = scalar_lea.sflag [#allocation5], %s338
        %s340 = sand.u32 %s45, 1
        %s341 = smul.addr %s340, 32
        %s342 = scalar_lea.vmem [#allocation4], %s341
        %p343 = pneg %p58
        %p344 = pneg %p55
        %p345 = pneg %p79
        %p346 = pneg %p76
        %p347 = pneg %p100
        %p348 = pneg %p97
        %p349 = pneg %p126
        %p350 = pneg %p123
        %s351 = smul.u32 2, %s30
        %p352 = scmp.lt.s32.totalorder %s351, 1
        %s353 = scalar_select %p352, %s351, 1
        %s354 = scalar_lea.vmem %s4, %s353
        %p355 = pneg %p152
        %p356 = pneg %p149
        %p357 = pneg %p178
        %p358 = pneg %p175
        %p359 = pneg %p199
        %p360 = pneg %p196
        %p361 = pneg %p225
        %p362 = pneg %p222
        %s363 = sand.u32 %s212, 1
        %s364 = scalar_lea.sflag [#allocation6], %s363
        %s365 = sand.u32 %s212, 1
        %s366 = smul.addr %s365, 32
        %s367 = scalar_lea.vmem [#allocation10], %s366
        %s368 = smul.u32 4, %s29
        %s369 = smul.u32 2, %s30
        %s370 = smul.u32 2, %s30
        %p371 = scmp.lt.s32.totalorder %s370, 1
        %s372 = scalar_select %p371, %s370, 1
        %s373 = scalar_lea.vmem %s4, %s372
        %s374 = smul.u32 2, %s30
        %s375 = smul.u32 32, %s30
        %s376 = smul.u32 4, %s29
        %p378 = scmp.eq.s32.totalorder %s30, 0
        // Predicated region
        $region61: #{tpu_custom_call.1} parent=47 // pred_check
          %p379 = pneg %p378
        $region62: #{tpu_custom_call.1} parent=47 // pred_check_branch
          %381 = sbr.rel (%p379) target = $region64
        $region63: #{tpu_custom_call.1} parent=47 // pred_region
          %v382 = vld [vmem:[%s325] sm:$0xff]
          %v383 = vld [vmem:[%s325 + $0x8] sm:$0xff]
          %v384 = vld [vmem:[%s325 + $0x10] sm:$0xff]
          %v385 = vld [vmem:[%s325 + $0x18] sm:$0xff]
          %386 = vadd.xlane.f32.xlu0 %v382
          %v387 = vpop.xlane.xlu0 %386
          %388 = vadd.xlane.f32.xlu0 %v383
          %v389 = vpop.xlane.xlu0 %388
          %390 = vadd.xlane.f32.xlu0 %v384
          %v391 = vpop.xlane.xlu0 %390
          %392 = vadd.xlane.f32.xlu0 %v385
          %v393 = vpop.xlane.xlu0 %392
          %v394 = vrcp.pop 128.0
          %v395 = vmul.f32 %v387, %v394
          %v396 = vmul.f32 %v389, %v394
          %v397 = vmul.f32 %v391, %v394
          %v398 = vmul.f32 %v393, %v394
          %v399 = vmul.f32 %v382, %v382
          %v400 = vmul.f32 %v383, %v383
          %v401 = vmul.f32 %v384, %v384
          %v402 = vmul.f32 %v385, %v385
          %403 = vadd.xlane.f32.xlu0 %v399
          %v404 = vpop.xlane.xlu0 %403
          %405 = vadd.xlane.f32.xlu0 %v400
          %v406 = vpop.xlane.xlu0 %405
          %407 = vadd.xlane.f32.xlu0 %v401
          %v408 = vpop.xlane.xlu0 %407
          %409 = vadd.xlane.f32.xlu0 %v402
          %v410 = vpop.xlane.xlu0 %409
          %v411 = vmul.f32 %v404, %v394
          %v412 = vmul.f32 %v406, %v394
          %v413 = vmul.f32 %v408, %v394
          %v414 = vmul.f32 %v410, %v394
          %v415 = vmul.f32 %v395, %v395
          %v416 = vmul.f32 %v396, %v396
          %v417 = vmul.f32 %v397, %v397
          %v418 = vmul.f32 %v398, %v398
          %v419 = vsub.f32 %v411, %v415
          %v420 = vsub.f32 %v412, %v416
          %v421 = vsub.f32 %v413, %v417
          %v422 = vsub.f32 %v414, %v418
          %v423 = vsub.f32 %v382, %v395
          %v424 = vsub.f32 %v383, %v396
          %v425 = vsub.f32 %v384, %v397
          %v426 = vsub.f32 %v385, %v398
          %v427 = vadd.f32 %v419, 1e-05
          %v428 = vadd.f32 %v420, 1e-05
          %v429 = vadd.f32 %v421, 1e-05
          %v430 = vadd.f32 %v422, 1e-05
          %v431 = vrsqrt.pop %v427
          %v432 = vrsqrt.pop %v428
          %v433 = vrsqrt.pop %v429
          %v434 = vrsqrt.pop %v430
          %v435 = vmul.f32 %v423, %v431
          %v436 = vmul.f32 %v424, %v432
          %v437 = vmul.f32 %v425, %v433
          %v438 = vmul.f32 %v426, %v434
          %v439 = vld [vmem:[%s1] sm:$0x1]
          %v441 = vlaneseq
          %v442 = vshrl.u32 %v441, 7
          %v443 = vsub.s32 0, %v442
          %v444 = vrot.slane %v439, %v443
          %v446 = vmul.f32 %v435, %v444
          %v447 = vmul.f32 %v436, %v444
          %v448 = vmul.f32 %v437, %v444
          %v449 = vmul.f32 %v438, %v444
          %v450 = vld [vmem:[%s2] sm:$0x1]
          %v452 = vlaneseq
          %v453 = vshrl.u32 %v452, 7
          %v454 = vsub.s32 0, %v453
          %v455 = vrot.slane %v450, %v454
          %v457 = vadd.f32 %v446, %v455
          %v458 = vadd.f32 %v447, %v455
          %v459 = vadd.f32 %v448, %v455
          %v460 = vadd.f32 %v449, %v455
          %v461 = vpack.c.bf16 %v458, %v457
          %v462 = vpack.c.bf16 %v460, %v459
          %463 = vst [vmem:[#allocation3] sm:$0xff] %v461
          %464 = vst [vmem:[#allocation3 + $0x8] sm:$0xff] %v462
          %465 = vst [vmem:[#allocation2] sm:$0xff] 0.0
          %466 = vst [vmem:[#allocation2 + $0x8] sm:$0xff] 0.0
          %467 = vst [vmem:[#allocation2 + $0x10] sm:$0xff] 0.0
          %468 = vst [vmem:[#allocation2 + $0x18] sm:$0xff] 0.0
        $region64: #{tpu_custom_call.1} parent=47 // pred_fallthru
          _
        %v469 = vld [vmem:[#allocation3] sm:$0xff]
        %v470 = vld [vmem:[#allocation3 + $0x8] sm:$0xff]
        %v471 = vld [vmem:[#allocation7] sm:$0xff]
        %v472 = vld [vmem:[#allocation7 + $0x8] sm:$0xff]
        %v473 = vld [vmem:[#allocation7 + $0x10] sm:$0xff]
        %v474 = vld [vmem:[#allocation7 + $0x18] sm:$0xff]
        %v475 = vld [vmem:[#allocation7 + $0x20] sm:$0xff]
        %v476 = vld [vmem:[#allocation7 + $0x28] sm:$0xff]
        %v477 = vld [vmem:[#allocation7 + $0x30] sm:$0xff]
        %v478 = vld [vmem:[#allocation7 + $0x38] sm:$0xff]
        %v479 = vld [vmem:[#allocation7 + $0x40] sm:$0xff]
        %v480 = vld [vmem:[#allocation7 + $0x48] sm:$0xff]
        %v481 = vld [vmem:[#allocation7 + $0x50] sm:$0xff]
        %v482 = vld [vmem:[#allocation7 + $0x58] sm:$0xff]
        %v483 = vld [vmem:[#allocation7 + $0x60] sm:$0xff]
        %v484 = vld [vmem:[#allocation7 + $0x68] sm:$0xff]
        %v485 = vld [vmem:[#allocation7 + $0x70] sm:$0xff]
        %v486 = vld [vmem:[#allocation7 + $0x78] sm:$0xff]
        %v487 = vld [vmem:[%s373] sm:$0x3]
        %v489 = vlaneseq
        %v490 = vshrl.u32 %v489, 7
        %v491 = vsub.s32 0, %v490
        %v492 = vrot.slane %v487, %v491
        %v493 = vlaneseq
        %v494 = vshrl.u32 %v493, 7
        %v495 = vsub.s32 1, %v494
        %v496 = vrot.slane %v487, %v495
        %v515 = vunpack.c.l.b16 %v471
        %v516 = vunpack.c.h.b16 %v471
        %v517 = vunpack.c.l.b16 %v472
        %v518 = vunpack.c.h.b16 %v472
        %v519 = vunpack.c.l.b16 %v473
        %v520 = vunpack.c.h.b16 %v473
        %v521 = vunpack.c.l.b16 %v474
        %v522 = vunpack.c.h.b16 %v474
        %v523 = vunpack.c.l.b16 %v475
        %v524 = vunpack.c.h.b16 %v475
        %v525 = vunpack.c.l.b16 %v476
        %v526 = vunpack.c.h.b16 %v476
        %v527 = vunpack.c.l.b16 %v477
        %v528 = vunpack.c.h.b16 %v477
        %v529 = vunpack.c.l.b16 %v478
        %v530 = vunpack.c.h.b16 %v478
        %v531 = vunpack.c.l.b16 %v479
        %v532 = vunpack.c.h.b16 %v479
        %v533 = vunpack.c.l.b16 %v480
        %v534 = vunpack.c.h.b16 %v480
        %v535 = vunpack.c.l.b16 %v481
        %v536 = vunpack.c.h.b16 %v481
        %v537 = vunpack.c.l.b16 %v482
        %v538 = vunpack.c.h.b16 %v482
        %v539 = vunpack.c.l.b16 %v483
        %v540 = vunpack.c.h.b16 %v483
        %v541 = vunpack.c.l.b16 %v484
        %v542 = vunpack.c.h.b16 %v484
        %v543 = vunpack.c.l.b16 %v485
        %v544 = vunpack.c.h.b16 %v485
        %v545 = vunpack.c.l.b16 %v486
        %v546 = vunpack.c.h.b16 %v486
        %v547 = vpack.c.b16 %v517, %v515
        %v548 = vpack.c.b16 %v518, %v516
        %v549 = vpack.c.b16 %v521, %v519
        %v550 = vpack.c.b16 %v522, %v520
        %v551 = vpack.c.b16 %v525, %v523
        %v552 = vpack.c.b16 %v526, %v524
        %v553 = vpack.c.b16 %v529, %v527
        %v554 = vpack.c.b16 %v530, %v528
        %v555 = vpack.c.b16 %v533, %v531
        %v556 = vpack.c.b16 %v534, %v532
        %v557 = vpack.c.b16 %v537, %v535
        %v558 = vpack.c.b16 %v538, %v536
        %v559 = vpack.c.b16 %v541, %v539
        %v560 = vpack.c.b16 %v542, %v540
        %v561 = vpack.c.b16 %v545, %v543
        %v562 = vpack.c.b16 %v546, %v544
        %579 = vmatprep.subr.bf16.mxu0 %v548
        %580 = vmatpush1.bf16.msra.mxu0 %v547
        %581 = vmatprep.subr.bf16.mxu0 %v550
        %582 = vmatpush1.bf16.msra.mxu0 %v549
        %583 = vmatprep.subr.bf16.mxu0 %v552
        %584 = vmatpush1.bf16.msra.mxu0 %v551
        %585 = vmatprep.subr.bf16.mxu0 %v554
        %586 = vmatpush1.bf16.msra.mxu0 %v553
        %587 = vmatprep.subr.bf16.mxu0 %v556
        %588 = vmatpush1.bf16.msra.mxu0 %v555
        %589 = vmatprep.subr.bf16.mxu0 %v558
        %590 = vmatpush1.bf16.msra.mxu0 %v557
        %591 = vmatprep.subr.bf16.mxu0 %v560
        %592 = vmatpush1.bf16.msra.mxu0 %v559
        %593 = vmatprep.subr.bf16.mxu0 %v562
        %594 = vmatpush1.bf16.msra.mxu0 %v561
        %595 = vmatprep.subr.bf16.mxu0 0
        %596 = vmatpush1.bf16.msra.mxu0 0
        %597 = vmatprep.subr.bf16.mxu0 0
        %598 = vmatpush1.bf16.msra.mxu0 0
        %599 = vmatprep.subr.bf16.mxu0 0
        %600 = vmatpush1.bf16.msra.mxu0 0
        %601 = vmatprep.subr.bf16.mxu0 0
        %602 = vmatpush1.bf16.msra.mxu0 0
        %603 = vmatprep.subr.bf16.mxu0 0
        %604 = vmatpush1.bf16.msra.mxu0 0
        %605 = vmatprep.subr.bf16.mxu0 0
        %606 = vmatpush1.bf16.msra.mxu0 0
        %607 = vmatprep.subr.bf16.mxu0 0
        %608 = vmatpush1.bf16.msra.mxu0 0
        %609 = vmatprep.subr.bf16.mxu0 0
        %610 = vmatpush1.bf16.msra.mxu0 0
        %611 = vmatprep.mubr.bf16.mxu0 0
        %612 = vmatmul.mubr.bf16.gmra.mrb[0].mxu0 %v469
        %v613 = vpop.f32.mrb[0].mxu0
        %v614 = vadd.f32 %v492, %v613
        %v615 = vpop.f32.mrb[0].mxu0
        %v616 = vadd.f32 %v496, %v615
        %v617 = vpop.f32.mrb[0].mxu0
        %v618 = vadd.f32 %v492, %v617
        %v619 = vpop.f32.mrb[0].mxu0
        %v620 = vadd.f32 %v496, %v619
        %621 = vmatprep.mubr.bf16.mxu0 0
        %622 = vmatmul.mubr.bf16.gmra.mrb[0].mxu0 %v470
        %v623 = vpop.f32.mrb[0].mxu0
        %v624 = vadd.f32 %v492, %v623
        %v625 = vpop.f32.mrb[0].mxu0
        %v626 = vadd.f32 %v496, %v625
        %v627 = vpop.f32.mrb[0].mxu0
        %v628 = vadd.f32 %v492, %v627
        %v629 = vpop.f32.mrb[0].mxu0
        %v630 = vadd.f32 %v496, %v629
        %631 = vdwg.mxu0
        %v632 = vmul.f32 %v614, %v614
        %v633 = vmul.f32 %v616, %v616
        %v634 = vmul.f32 %v618, %v618
        %v635 = vmul.f32 %v620, %v620
        %v636 = vmul.f32 %v624, %v624
        %v637 = vmul.f32 %v626, %v626
        %v638 = vmul.f32 %v628, %v628
        %v639 = vmul.f32 %v630, %v630
        %v640 = vmul.f32 %v614, %v632
        %v641 = vmul.f32 %v616, %v633
        %v642 = vmul.f32 %v618, %v634
        %v643 = vmul.f32 %v620, %v635
        %v644 = vmul.f32 %v624, %v636
        %v645 = vmul.f32 %v626, %v637
        %v646 = vmul.f32 %v628, %v638
        %v647 = vmul.f32 %v630, %v639
        %v648 = vmul.f32 %v640, 0.044715
        %v649 = vmul.f32 %v641, 0.044715
        %v650 = vmul.f32 %v642, 0.044715
        %v651 = vmul.f32 %v643, 0.044715
        %v652 = vmul.f32 %v644, 0.044715
        %v653 = vmul.f32 %v645, 0.044715
        %v654 = vmul.f32 %v646, 0.044715
        %v655 = vmul.f32 %v647, 0.044715
        %v656 = vadd.f32 %v614, %v648
        %v657 = vadd.f32 %v616, %v649
        %v658 = vadd.f32 %v618, %v650
        %v659 = vadd.f32 %v620, %v651
        %v660 = vadd.f32 %v624, %v652
        %v661 = vadd.f32 %v626, %v653
        %v662 = vadd.f32 %v628, %v654
        %v663 = vadd.f32 %v630, %v655
        %v664 = vmul.f32 %v656, 0.7978846
        %v665 = vmul.f32 %v657, 0.7978846
        %v666 = vmul.f32 %v658, 0.7978846
        %v667 = vmul.f32 %v659, 0.7978846
        %v668 = vmul.f32 %v660, 0.7978846
        %v669 = vmul.f32 %v661, 0.7978846
        %v670 = vmul.f32 %v662, 0.7978846
        %v671 = vmul.f32 %v663, 0.7978846
        %v672 = vtanh.pop %v664
        %v673 = vtanh.pop %v665
        %v674 = vtanh.pop %v666
        %v675 = vtanh.pop %v667
        %v676 = vtanh.pop %v668
        %v677 = vtanh.pop %v669
        %v678 = vtanh.pop %v670
        %v679 = vtanh.pop %v671
        %v680 = vadd.f32 %v672, 1.0
        %v681 = vadd.f32 %v673, 1.0
        %v682 = vadd.f32 %v674, 1.0
        %v683 = vadd.f32 %v675, 1.0
        %v684 = vadd.f32 %v676, 1.0
        %v685 = vadd.f32 %v677, 1.0
        %v686 = vadd.f32 %v678, 1.0
        %v687 = vadd.f32 %v679, 1.0
        %v688 = vmul.f32 %v680, 0.5
        %v689 = vmul.f32 %v681, 0.5
        %v690 = vmul.f32 %v682, 0.5
        %v691 = vmul.f32 %v683, 0.5
        %v692 = vmul.f32 %v684, 0.5
        %v693 = vmul.f32 %v685, 0.5
        %v694 = vmul.f32 %v686, 0.5
        %v695 = vmul.f32 %v687, 0.5
        %v696 = vmul.f32 %v614, %v688
        %v697 = vmul.f32 %v616, %v689
        %v698 = vmul.f32 %v618, %v690
        %v699 = vmul.f32 %v620, %v691
        %v700 = vmul.f32 %v624, %v692
        %v701 = vmul.f32 %v626, %v693
        %v702 = vmul.f32 %v628, %v694
        %v703 = vmul.f32 %v630, %v695
        %v704 = vld [vmem:[#allocation2] sm:$0xff]
        %v705 = vld [vmem:[#allocation2 + $0x8] sm:$0xff]
        %v706 = vld [vmem:[#allocation2 + $0x10] sm:$0xff]
        %v707 = vld [vmem:[#allocation2 + $0x18] sm:$0xff]
        %v708 = vpack.c.bf16 %v698, %v696
        %v709 = vpack.c.bf16 %v699, %v697
        %v710 = vpack.c.bf16 %v702, %v700
        %v711 = vpack.c.bf16 %v703, %v701
        %v712 = vld [vmem:[#allocation9] sm:$0xf]
        %v713 = vld [vmem:[#allocation9 + $0x4] sm:$0xf]
        %v714 = vld [vmem:[#allocation9 + $0x8] sm:$0xf]
        %v715 = vld [vmem:[#allocation9 + $0xc] sm:$0xf]
        %v716 = vld [vmem:[#allocation9 + $0x10] sm:$0xf]
        %v717 = vld [vmem:[#allocation9 + $0x14] sm:$0xf]
        %v718 = vld [vmem:[#allocation9 + $0x18] sm:$0xf]
        %v719 = vld [vmem:[#allocation9 + $0x1c] sm:$0xf]
        %v720 = vld [vmem:[#allocation9 + $0x20] sm:$0xf]
        %v721 = vld [vmem:[#allocation9 + $0x24] sm:$0xf]
        %v722 = vld [vmem:[#allocation9 + $0x28] sm:$0xf]
        %v723 = vld [vmem:[#allocation9 + $0x2c] sm:$0xf]
        %v724 = vld [vmem:[#allocation9 + $0x30] sm:$0xf]
        %v725 = vld [vmem:[#allocation9 + $0x34] sm:$0xf]
        %v726 = vld [vmem:[#allocation9 + $0x38] sm:$0xf]
        %v727 = vld [vmem:[#allocation9 + $0x3c] sm:$0xf]
        %v728 = vld [vmem:[#allocation9 + $0x40] sm:$0xf]
        %v729 = vld [vmem:[#allocation9 + $0x44] sm:$0xf]
        %v730 = vld [vmem:[#allocation9 + $0x48] sm:$0xf]
        %v731 = vld [vmem:[#allocation9 + $0x4c] sm:$0xf]
        %v732 = vld [vmem:[#allocation9 + $0x50] sm:$0xf]
        %v733 = vld [vmem:[#allocation9 + $0x54] sm:$0xf]
        %v734 = vld [vmem:[#allocation9 + $0x58] sm:$0xf]
        %v735 = vld [vmem:[#allocation9 + $0x5c] sm:$0xf]
        %v736 = vld [vmem:[#allocation9 + $0x60] sm:$0xf]
        %v737 = vld [vmem:[#allocation9 + $0x64] sm:$0xf]
        %v738 = vld [vmem:[#allocation9 + $0x68] sm:$0xf]
        %v739 = vld [vmem:[#allocation9 + $0x6c] sm:$0xf]
        %v740 = vld [vmem:[#allocation9 + $0x70] sm:$0xf]
        %v741 = vld [vmem:[#allocation9 + $0x74] sm:$0xf]
        %v742 = vld [vmem:[#allocation9 + $0x78] sm:$0xf]
        %v743 = vld [vmem:[#allocation9 + $0x7c] sm:$0xf]
        %v776 = vunpack.c.l.b16 %v712
        %v777 = vunpack.c.l.b16 %v713
        %v778 = vunpack.c.l.b16 %v714
        %v779 = vunpack.c.l.b16 %v715
        %v780 = vunpack.c.l.b16 %v716
        %v781 = vunpack.c.l.b16 %v717
        %v782 = vunpack.c.l.b16 %v718
        %v783 = vunpack.c.l.b16 %v719
        %v784 = vunpack.c.l.b16 %v720
        %v785 = vunpack.c.l.b16 %v721
        %v786 = vunpack.c.l.b16 %v722
        %v787 = vunpack.c.l.b16 %v723
        %v788 = vunpack.c.l.b16 %v724
        %v789 = vunpack.c.l.b16 %v725
        %v790 = vunpack.c.l.b16 %v726
        %v791 = vunpack.c.l.b16 %v727
        %v792 = vunpack.c.l.b16 %v728
        %v793 = vunpack.c.l.b16 %v729
        %v794 = vunpack.c.l.b16 %v730
        %v795 = vunpack.c.l.b16 %v731
        %v796 = vunpack.c.l.b16 %v732
        %v797 = vunpack.c.l.b16 %v733
        %v798 = vunpack.c.l.b16 %v734
        %v799 = vunpack.c.l.b16 %v735
        %v800 = vunpack.c.l.b16 %v736
        %v801 = vunpack.c.l.b16 %v737
        %v802 = vunpack.c.l.b16 %v738
        %v803 = vunpack.c.l.b16 %v739
        %v804 = vunpack.c.l.b16 %v740
        %v805 = vunpack.c.l.b16 %v741
        %v806 = vunpack.c.l.b16 %v742
        %v807 = vunpack.c.l.b16 %v743
        %v808 = vpack.c.b16 %v777, %v776
        %v809 = vpack.c.b16 %v779, %v778
        %v810 = vpack.c.b16 %v781, %v780
        %v811 = vpack.c.b16 %v783, %v782
        %v812 = vpack.c.b16 %v785, %v784
        %v813 = vpack.c.b16 %v787, %v786
        %v814 = vpack.c.b16 %v789, %v788
        %v815 = vpack.c.b16 %v791, %v790
        %v816 = vpack.c.b16 %v793, %v792
        %v817 = vpack.c.b16 %v795, %v794
        %v818 = vpack.c.b16 %v797, %v796
        %v819 = vpack.c.b16 %v799, %v798
        %v820 = vpack.c.b16 %v801, %v800
        %v821 = vpack.c.b16 %v803, %v802
        %v822 = vpack.c.b16 %v805, %v804
        %v823 = vpack.c.b16 %v807, %v806
        %840 = vmatprep.subr.bf16.mxu0 0
        %841 = vmatpush1.bf16.msra.mxu0 %v808
        %842 = vmatprep.subr.bf16.mxu0 0
        %843 = vmatpush1.bf16.msra.mxu0 %v809
        %844 = vmatprep.subr.bf16.mxu0 0
        %845 = vmatpush1.bf16.msra.mxu0 %v810
        %846 = vmatprep.subr.bf16.mxu0 0
        %847 = vmatpush1.bf16.msra.mxu0 %v811
        %848 = vmatprep.subr.bf16.mxu0 0
        %849 = vmatpush1.bf16.msra.mxu0 %v812
        %850 = vmatprep.subr.bf16.mxu0 0
        %851 = vmatpush1.bf16.msra.mxu0 %v813
        %852 = vmatprep.subr.bf16.mxu0 0
        %853 = vmatpush1.bf16.msra.mxu0 %v814
        %854 = vmatprep.subr.bf16.mxu0 0
        %855 = vmatpush1.bf16.msra.mxu0 %v815
        %856 = vmatprep.subr.bf16.mxu0 0
        %857 = vmatpush1.bf16.msra.mxu0 %v816
        %858 = vmatprep.subr.bf16.mxu0 0
        %859 = vmatpush1.bf16.msra.mxu0 %v817
        %860 = vmatprep.subr.bf16.mxu0 0
        %861 = vmatpush1.bf16.msra.mxu0 %v818
        %862 = vmatprep.subr.bf16.mxu0 0
        %863 = vmatpush1.bf16.msra.mxu0 %v819
        %864 = vmatprep.subr.bf16.mxu0 0
        %865 = vmatpush1.bf16.msra.mxu0 %v820
        %866 = vmatprep.subr.bf16.mxu0 0
        %867 = vmatpush1.bf16.msra.mxu0 %v821
        %868 = vmatprep.subr.bf16.mxu0 0
        %869 = vmatpush1.bf16.msra.mxu0 %v822
        %870 = vmatprep.subr.bf16.mxu0 0
        %871 = vmatpush1.bf16.msra.mxu0 %v823
        %872 = vmatprep.mubr.bf16.mxu0 %v709
        %873 = vmatmul.mubr.bf16.gmra.mrb[0].mxu0 %v708
        %v874 = vpop.f32.mrb[0].mxu0
        %v875 = vadd.f32 0.0, %v874
        %v876 = vpop.f32.mrb[0].mxu0
        %v877 = vpop.f32.mrb[0].mxu0
        %v878 = vadd.f32 0.0, %v877
        %v879 = vpop.f32.mrb[0].mxu0
        %880 = vmatprep.mubr.bf16.mxu0 %v711
        %881 = vmatmul.mubr.bf16.gmra.mrb[0].mxu0 %v710
        %v882 = vpop.f32.mrb[0].mxu0
        %v883 = vadd.f32 0.0, %v882
        %v884 = vpop.f32.mrb[0].mxu0
        %v885 = vpop.f32.mrb[0].mxu0
        %v886 = vadd.f32 0.0, %v885
        %v887 = vpop.f32.mrb[0].mxu0
        %888 = vdwg.mxu0
        %v889 = vadd.f32 %v704, %v875
        %v890 = vadd.f32 %v705, %v878
        %v891 = vadd.f32 %v706, %v883
        %v892 = vadd.f32 %v707, %v886
        %893 = vst [vmem:[#allocation2] sm:$0xff] %v889
        %894 = vst [vmem:[#allocation2 + $0x8] sm:$0xff] %v890
        %895 = vst [vmem:[#allocation2 + $0x10] sm:$0xff] %v891
        %896 = vst [vmem:[#allocation2 + $0x18] sm:$0xff] %v892
        // Predicated region
        $region65: #{tpu_custom_call.1} parent=47 // pred_check
          %p897 = pneg %p378
        $region66: #{tpu_custom_call.1} parent=47 // pred_check_branch
          %899 = sbr.rel (%p897) target = $region68
        $region67: #{tpu_custom_call.1} parent=47 // pred_region
          %v900 = vld [vmem:[%s325] sm:$0xff]
          %v901 = vld [vmem:[%s325 + $0x8] sm:$0xff]
          %v902 = vld [vmem:[%s325 + $0x10] sm:$0xff]
          %v903 = vld [vmem:[%s325 + $0x18] sm:$0xff]
          %v904 = vld [vmem:[#allocation2] sm:$0xff]
          %v905 = vld [vmem:[#allocation2 + $0x8] sm:$0xff]
          %v906 = vld [vmem:[#allocation2 + $0x10] sm:$0xff]
          %v907 = vld [vmem:[#allocation2 + $0x18] sm:$0xff]
          %v908 = vadd.f32 %v900, %v904
          %v909 = vadd.f32 %v901, %v905
          %v910 = vadd.f32 %v902, %v906
          %v911 = vadd.f32 %v903, %v907
          %v912 = vld [vmem:[%s6] sm:$0x1]
          %v914 = vlaneseq
          %v915 = vshrl.u32 %v914, 7
          %v916 = vsub.s32 0, %v915
          %v917 = vrot.slane %v912, %v916
          %v919 = vadd.f32 %v908, %v917
          %v920 = vadd.f32 %v909, %v917
          %v921 = vadd.f32 %v910, %v917
          %v922 = vadd.f32 %v911, %v917
          %923 = vst [vmem:[%s367] sm:$0xff] %v919
          %924 = vst [vmem:[%s367 + $0x8] sm:$0xff] %v920
          %925 = vst [vmem:[%s367 + $0x10] sm:$0xff] %v921
          %926 = vst [vmem:[%s367 + $0x18] sm:$0xff] %v922
        $region68: #{tpu_custom_call.1} parent=47 // pred_fallthru
          _
        %s927 = sand.u32 %s212, 1
        %s928 = scalar_lea.sflag [#allocation6], %s927
        %s929 = sand.u32 %s212, 1
        %s930 = smul.addr %s929, 32
        %s931 = scalar_lea.vmem [#allocation10], %s930
        // Predicated region
        $region69: #{tpu_custom_call.1} parent=47 // pred_check
          %p932 = pneg %p222
        $region70: #{tpu_custom_call.1} parent=47 // pred_check_branch
          %934 = sbr.rel (%p932) target = $region72
        $region71: #{tpu_custom_call.1} parent=47 // pred_region
          %s935 = smul.u32 4, %s29
          %s937 = ssub.s32 512, 512
          %938 = vsyncadd %s928, %s937
          %s939 = smul.addr %s935, 128
          %s940 = scalar_lea.hbm %s7, %s939
          %s941 = sshll.u32 %s931, 4
          %s942 = int_to_ptr.vmem [resolvable:$true] %s941
          %947 = dma.vmem_to_hbm [thread:$0]  %s942, 512, %s940, %s928, 128, 128, 8
        $region72: #{tpu_custom_call.1} parent=47 // pred_fallthru
          _
      $region48: #{tpu_custom_call.1} parent=5 // pred_fallthru
        _
      %p948 = scmp.le.s32.totalorder 2, %s20
      // Predicated region
      $region73: #{tpu_custom_call.1} parent=5 // pred_check
        %p949 = pneg %p948
      $region74: #{tpu_custom_call.1} parent=5 // pred_check_branch
        %951 = sbr.rel (%p949) target = $region76
      $region75: #{tpu_custom_call.1} parent=5 // pred_region
        %s952 = ssub.s32 %s20, 2
        // Predicated region
        $region77: #{tpu_custom_call.1} parent=75 // pred_check
          %p953 = pneg %p228
        $region78: #{tpu_custom_call.1} parent=75 // pred_check_branch
          %955 = sbr.rel (%p953) target = $region80
        $region79: #{tpu_custom_call.1} parent=75 // pred_region
          %s956 = sand.u32 %s213, 1
          %s957 = scalar_lea.sflag [#allocation6], %s956
          %s958 = sand.u32 %s213, 1
          %s959 = smul.addr %s958, 32
          %s960 = scalar_lea.vmem [#allocation10], %s959
          %961 = dma.done %s957, 512
        $region80: #{tpu_custom_call.1} parent=75 // pred_fallthru
          _
      $region76: #{tpu_custom_call.1} parent=5 // pred_fallthru
        _
    $region6: #{tpu_custom_call.1} parent=1 // loop_footer
      %s24 = sadd.s32 1, %s20
    $region7: #{tpu_custom_call.1} parent=1 // loop_footer_branch
      %19 = sbr.rel target = $region3
    $region8: #{tpu_custom_call.1} parent=1 // loop_exit
      _
    %962 = vsyncpa [#allocation5], 1
    %s963 = scalar_lea.sflag [#allocation5], 1
    %964 = vsyncpa %s963, 1
    %965 = vsyncpa [#allocation8], 1
    %966 = vsyncpa [#allocation6], 1
    %s967 = scalar_lea.sflag [#allocation6], 1
    %968 = vsyncpa %s967, 1

// kernel: tpu_custom_call.1
$region0: #{tpu_custom_call.1}
  #allocation0 [shape = 'u32[]', space=smem, size = 0x4, offset = 0x4, fixed_abs, tag = 'smem constant byte address 0x4 - core index']
  #allocation1 [shape = 'u32[144,128]{1,0:T(1,128)}', space=vmem, size = 0x12000, scoped, tag = 'internal scratch']
  #allocation2 [shape = 'f32[32,128]{1,0:T(8,128)}', space=vmem, size = 0x4000, scoped, tag = 'scratch operand']
  #allocation3 [shape = 'bf16[32,128]{1,0:T(16,128)(2,1)}', space=vmem, size = 0x2000, scoped, tag = 'scratch operand']
  %s0 = inlined_call_operand.hbm [shape: f32[64,128], index: 0, kind: input, shape index: {}]
  %s1 = inlined_call_operand.vmem [shape: f32[1,128], index: 1, kind: input, shape index: {}]
  %s2 = inlined_call_operand.vmem [shape: f32[1,128], index: 2, kind: input, shape index: {}]
  %s3 = inlined_call_operand.hbm [shape: bf16[128,256], index: 3, kind: input, shape index: {}]
  %s4 = inlined_call_operand.vmem [shape: f32[1,256], index: 4, kind: input, shape index: {}]
  %s5 = inlined_call_operand.hbm [shape: bf16[256,128], index: 5, kind: input, shape index: {}]
  %s6 = inlined_call_operand.vmem [shape: f32[1,128], index: 6, kind: input, shape index: {}]
  %s7 = inlined_call_operand.hbm [shape: f32[64,128], index: 7, kind: output, shape index: {}]
  %s8 = sld [smem:[#allocation0]]
  $region81: #{tpu_custom_call.1} parent=0
    _
  %s10 = ssub.s32 1, %s8
  %s11 = scalar_select 0, %s10, %s8
  $region1: #{tpu_custom_call.1} parent=0
    #allocation4 [shape = 'u8[32768]{0}', space=vmem, size = 0x8000, scoped, tag = 'input window, operand 0']
    #allocation5 [shape = 's32[2]{0}', space=sflag, size = 0x8, scoped, tag = 'scoped memory for tpu_custom_call.1']
    #allocation6 [shape = 's32[2]{0}', space=sflag, size = 0x8, scoped, tag = 'scoped memory for tpu_custom_call.1']
    #allocation7 [shape = 'u8[65536]{0}', space=vmem, size = 0x10000, scoped, tag = 'input window, operand 3, single buffered']
    #allocation8 [shape = 's32[1]{0}', space=sflag, size = 0x4, scoped, tag = 'scoped memory for tpu_custom_call.1']
    #allocation9 [shape = 'u8[65536]{0}', space=vmem, size = 0x10000, scoped, tag = 'input window, operand 5, single buffered']
    #allocation10 [shape = 'u8[32768]{0}', space=vmem, size = 0x8000, scoped, tag = 'output window, operand 0']
    %12 = vsyncpa [#allocation5], 0
    %s13 = scalar_lea.sflag [#allocation5], 1
    %14 = vsyncpa %s13, 0
    %15 = vsyncpa [#allocation8], 0
    %16 = vsyncpa [#allocation6], 0
    %s17 = scalar_lea.sflag [#allocation6], 1
    %18 = vsyncpa %s17, 0
    loop: start=0, step=1, limit=4
    $region2: #{tpu_custom_call.1} parent=1 // loop_pre_header
      _
    $region3: #{tpu_custom_call.1} parent=1 // loop_header
      %s20 = sphi 0, %s24
      %p21 = scmp.ge.s32.totalorder %s20, 4
      %s27 = sphi 0, %s39
      %s28 = sphi 0, %s35
      %s29 = sphi 0, %s27
      %s30 = sphi 0, %s28
      %s31 = sphi 0, %s29
      %s32 = sphi 0, %s30
      %s42 = sphi 0, %s44
      %s45 = sphi 0, %s42
      %s46 = sphi 0, %s45
      %s62 = sphi 0, %s46
      %s66 = sphi 0, %s66
      %s68 = sphi 0, %s66
      %s69 = sphi 0, %s68
      %s83 = sphi 0, %s69
      %s87 = sphi 0, %s87
      %s89 = sphi 0, %s87
      %s90 = sphi 0, %s89
      %s104 = sphi 0, %s90
      %s110 = sphi 0, %s112
      %s113 = sphi 0, %s110
      %s114 = sphi 0, %s113
      %s130 = sphi 0, %s114
      %s136 = sphi 0, %s138
      %s139 = sphi 0, %s136
      %s140 = sphi 0, %s139
      %s156 = sphi 0, %s140
      %s162 = sphi 0, %s164
      %s165 = sphi 0, %s162
      %s166 = sphi 0, %s165
      %s182 = sphi 0, %s166
      %s186 = sphi 0, %s186
      %s188 = sphi 0, %s186
      %s189 = sphi 0, %s188
      %s203 = sphi 0, %s189
      %s209 = sphi 0, %s211
      %s212 = sphi 0, %s209
      %s213 = sphi 0, %s212
      %s229 = sphi 0, %s213
    $region4: #{tpu_custom_call.1} parent=1 // loop_header_branch
      %23 = sbr.rel (%p21) target = $region8
    $region5: #{tpu_custom_call.1} parent=1 // loop_body
      %s25 = ssub.s32 %s20, 1
      %s26 = ssub.s32 %s20, 2
      %s33 = sadd.s32 1, %s28
      %p34 = scmp.ge.s32.totalorder %s33, 1
      %s35 = scalar_select %p34, 0, %s33
      %s36 = sadd.s32 1, %s27
      %s37 = scalar_select %p34, %s36, %s27
      %p38 = scmp.ge.s32.totalorder %s37, 2
      %s39 = scalar_select %p38, 0, %s37
      %s40 = ssub.s32 %s27, %s39
      %p41 = scmp.eq.s32.totalorder %s40, 0
      %s43 = sadd.s32 %s42, 1
      %s44 = scalar_select %p41, %s42, %s43
      %p47 = pneg %p41
      %p48 = scmp.eq.s32.totalorder %s20, 1
      %p49 = por %p47, %p48
      %p50 = scmp.ne.s32.totalorder %s42, %s45
      %p51 = scmp.eq.s32.totalorder %s20, 0
      %p52 = por %p50, %p51
      %p53 = scmp.ne.s32.totalorder %s42, %s45
      %p54 = scmp.eq.s32.totalorder %s25, 1
      %p55 = por %p53, %p54
      %p56 = scmp.ne.s32.totalorder %s45, %s46
      %p57 = scmp.eq.s32.totalorder %s25, 0
      %p58 = por %p56, %p57
      %p59 = scmp.ne.s32.totalorder %s45, %s46
      %p60 = scmp.eq.s32.totalorder %s26, 1
      %p61 = por %p59, %p60
      %p63 = scmp.ne.s32.totalorder %s46, %s62
      %p64 = scmp.eq.s32.totalorder %s26, 0
      %p65 = por %p63, %p64
      %s67 = sadd.s32 %s66, 1
      %p70 = scmp.eq.s32.totalorder %s20, 1
      %p71 = scmp.ne.s32.totalorder %s66, %s68
      %p72 = scmp.eq.s32.totalorder %s20, 0
      %p73 = por %p71, %p72
      %p74 = scmp.ne.s32.totalorder %s66, %s68
      %p75 = scmp.eq.s32.totalorder %s25, 1
      %p76 = por %p74, %p75
      %p77 = scmp.ne.s32.totalorder %s68, %s69
      %p78 = scmp.eq.s32.totalorder %s25, 0
      %p79 = por %p77, %p78
      %p80 = scmp.ne.s32.totalorder %s68, %s69
      %p81 = scmp.eq.s32.totalorder %s26, 1
      %p82 = por %p80, %p81
      %p84 = scmp.ne.s32.totalorder %s69, %s83
      %p85 = scmp.eq.s32.totalorder %s26, 0
      %p86 = por %p84, %p85
      %s88 = sadd.s32 %s87, 1
      %p91 = scmp.eq.s32.totalorder %s20, 1
      %p92 = scmp.ne.s32.totalorder %s87, %s89
      %p93 = scmp.eq.s32.totalorder %s20, 0
      %p94 = por %p92, %p93
      %p95 = scmp.ne.s32.totalorder %s87, %s89
      %p96 = scmp.eq.s32.totalorder %s25, 1
      %p97 = por %p95, %p96
      %p98 = scmp.ne.s32.totalorder %s89, %s90
      %p99 = scmp.eq.s32.totalorder %s25, 0
      %p100 = por %p98, %p99
      %p101 = scmp.ne.s32.totalorder %s89, %s90
      %p102 = scmp.eq.s32.totalorder %s26, 1
      %p103 = por %p101, %p102
      %p105 = scmp.ne.s32.totalorder %s90, %s104
      %p106 = scmp.eq.s32.totalorder %s26, 0
      %p107 = por %p105, %p106
      %s108 = ssub.s32 %s28, %s35
      %p109 = scmp.eq.s32.totalorder %s108, 0
      %s111 = sadd.s32 %s110, 1
      %s112 = scalar_select %p109, %s110, %s111
      %p115 = pneg %p109
      %p116 = scmp.eq.s32.totalorder %s20, 1
      %p117 = por %p115, %p116
      %p118 = scmp.ne.s32.totalorder %s110, %s113
      %p119 = scmp.eq.s32.totalorder %s20, 0
      %p120 = por %p118, %p119
      %p121 = scmp.ne.s32.totalorder %s110, %s113
      %p122 = scmp.eq.s32.totalorder %s25, 1
      %p123 = por %p121, %p122
      %p124 = scmp.ne.s32.totalorder %s113, %s114
      %p125 = scmp.eq.s32.totalorder %s25, 0
      %p126 = por %p124, %p125
      %p127 = scmp.ne.s32.totalorder %s113, %s114
      %p128 = scmp.eq.s32.totalorder %s26, 1
      %p129 = por %p127, %p128
      %p131 = scmp.ne.s32.totalorder %s114, %s130
      %p132 = scmp.eq.s32.totalorder %s26, 0
      %p133 = por %p131, %p132
      %s134 = ssub.s32 %s28, %s35
      %p135 = scmp.eq.s32.totalorder %s134, 0
      %s137 = sadd.s32 %s136, 1
      %s138 = scalar_select %p135, %s136, %s137
      %p141 = pneg %p135
      %p142 = scmp.eq.s32.totalorder %s20, 1
      %p143 = por %p141, %p142
      %p144 = scmp.ne.s32.totalorder %s136, %s139
      %p145 = scmp.eq.s32.totalorder %s20, 0
      %p146 = por %p144, %p145
      %p147 = scmp.ne.s32.totalorder %s136, %s139
      %p148 = scmp.eq.s32.totalorder %s25, 1
      %p149 = por %p147, %p148
      %p150 = scmp.ne.s32.totalorder %s139, %s140
      %p151 = scmp.eq.s32.totalorder %s25, 0
      %p152 = por %p150, %p151
      %p153 = scmp.ne.s32.totalorder %s139, %s140
      %p154 = scmp.eq.s32.totalorder %s26, 1
      %p155 = por %p153, %p154
      %p157 = scmp.ne.s32.totalorder %s140, %s156
      %p158 = scmp.eq.s32.totalorder %s26, 0
      %p159 = por %p157, %p158
      %s160 = ssub.s32 %s28, %s35
      %p161 = scmp.eq.s32.totalorder %s160, 0
      %s163 = sadd.s32 %s162, 1
      %s164 = scalar_select %p161, %s162, %s163
      %p167 = pneg %p161
      %p168 = scmp.eq.s32.totalorder %s20, 1
      %p169 = por %p167, %p168
      %p170 = scmp.ne.s32.totalorder %s162, %s165
      %p171 = scmp.eq.s32.totalorder %s20, 0
      %p172 = por %p170, %p171
      %p173 = scmp.ne.s32.totalorder %s162, %s165
      %p174 = scmp.eq.s32.totalorder %s25, 1
      %p175 = por %p173, %p174
      %p176 = scmp.ne.s32.totalorder %s165, %s166
      %p177 = scmp.eq.s32.totalorder %s25, 0
      %p178 = por %p176, %p177
      %p179 = scmp.ne.s32.totalorder %s165, %s166
      %p180 = scmp.eq.s32.totalorder %s26, 1
      %p181 = por %p179, %p180
      %p183 = scmp.ne.s32.totalorder %s166, %s182
      %p184 = scmp.eq.s32.totalorder %s26, 0
      %p185 = por %p183, %p184
      %s187 = sadd.s32 %s186, 1
      %p190 = scmp.eq.s32.totalorder %s20, 1
      %p191 = scmp.ne.s32.totalorder %s186, %s188
      %p192 = scmp.eq.s32.totalorder %s20, 0
      %p193 = por %p191, %p192
      %p194 = scmp.ne.s32.totalorder %s186, %s188
      %p195 = scmp.eq.s32.totalorder %s25, 1
      %p196 = por %p194, %p195
      %p197 = scmp.ne.s32.totalorder %s188, %s189
      %p198 = scmp.eq.s32.totalorder %s25, 0
      %p199 = por %p197, %p198
      %p200 = scmp.ne.s32.totalorder %s188, %s189
      %p201 = scmp.eq.s32.totalorder %s26, 1
      %p202 = por %p200, %p201
      %p204 = scmp.ne.s32.totalorder %s189, %s203
      %p205 = scmp.eq.s32.totalorder %s26, 0
      %p206 = por %p204, %p205
      %s207 = ssub.s32 %s27, %s39
      %p208 = scmp.eq.s32.totalorder %s207, 0
      %s210 = sadd.s32 %s209, 1
      %s211 = scalar_select %p208, %s209, %s210
      %p214 = pneg %p208
      %p215 = scmp.eq.s32.totalorder %s20, 1
      %p216 = por %p214, %p215
      %p217 = scmp.ne.s32.totalorder %s209, %s212
      %p218 = scmp.eq.s32.totalorder %s20, 0
      %p219 = por %p217, %p218
      %p220 = scmp.ne.s32.totalorder %s209, %s212
      %p221 = scmp.eq.s32.totalorder %s25, 1
      %p222 = por %p220, %p221
      %p223 = scmp.ne.s32.totalorder %s212, %s213
      %p224 = scmp.eq.s32.totalorder %s25, 0
      %p225 = por %p223, %p224
      %p226 = scmp.ne.s32.totalorder %s212, %s213
      %p227 = scmp.eq.s32.totalorder %s26, 1
      %p228 = por %p226, %p227
      %p230 = scmp.ne.s32.totalorder %s213, %s229
      %p231 = scmp.eq.s32.totalorder %s26, 0
      %p232 = por %p230, %p231
      %p233 = scmp.le.s32.totalorder 1, %s20
      %p234 = scmp.lt.s32.totalorder %s20, 3
      %p235 = pnand %p233, %p234
      %p236 = pneg %p235
      // Predicated region
      $region9: #{tpu_custom_call.1} parent=5 // pred_check
        _
      $region10: #{tpu_custom_call.1} parent=5 // pred_check_branch
        %238 = sbr.rel (%p235) target = $region12
      $region11: #{tpu_custom_call.1} parent=5 // pred_region
        %s239 = ssub.s32 %s20, 1
        // Predicated region
        $region13: #{tpu_custom_call.1} parent=11 // pred_check
          %p240 = pneg %p79
        $region14: #{tpu_custom_call.1} parent=11 // pred_check_branch
          %242 = sbr.rel (%p240) target = $region16
        $region15: #{tpu_custom_call.1} parent=11 // pred_region
          _
        $region16: #{tpu_custom_call.1} parent=11 // pred_fallthru
          _
        // Predicated region
        $region17: #{tpu_custom_call.1} parent=11 // pred_check
          %p243 = pneg %p100
        $region18: #{tpu_custom_call.1} parent=11 // pred_check_branch
          %245 = sbr.rel (%p243) target = $region20
        $region19: #{tpu_custom_call.1} parent=11 // pred_region
          _
        $region20: #{tpu_custom_call.1} parent=11 // pred_fallthru
          _
        // Predicated region
        $region21: #{tpu_custom_call.1} parent=11 // pred_check
          %p246 = pneg %p126
        $region22: #{tpu_custom_call.1} parent=11 // pred_check_branch
          %248 = sbr.rel (%p246) target = $region24
        $region23: #{tpu_custom_call.1} parent=11 // pred_region
          %s249 = smul.u32 2, %s30
          %s251 = ssub.s32 2048, 2048
          %252 = vsyncadd [#allocation8], %s251
          %s253 = smul.addr %s249, 64
          %s254 = scalar_lea.hbm %s3, %s253
          %s255 = sshll.u32 [#allocation7], 4
          %s256 = int_to_ptr.vmem [resolvable:$true] %s255
          %261 = dma.hbm_to_vmem [thread:$0]  %s254, 2048, %s256, [#allocation8], 128, 128, 8
        $region24: #{tpu_custom_call.1} parent=11 // pred_fallthru
          _
        // Predicated region
        $region25: #{tpu_custom_call.1} parent=11 // pred_check
          %p262 = pneg %p152
        $region26: #{tpu_custom_call.1} parent=11 // pred_check_branch
          %264 = sbr.rel (%p262) target = $region28
        $region27: #{tpu_custom_call.1} parent=11 // pred_region
          %s265 = smul.u32 2, %s30
          %p266 = scmp.lt.s32.totalorder %s265, 1
          %s267 = scalar_select %p266, %s265, 1
          %s268 = scalar_lea.vmem %s4, %s267
          %s269 = smul.u32 2, %s30
        $region28: #{tpu_custom_call.1} parent=11 // pred_fallthru
          _
        // Predicated region
        $region29: #{tpu_custom_call.1} parent=11 // pred_check
          %p270 = pneg %p178
        $region30: #{tpu_custom_call.1} parent=11 // pred_check_branch
          %272 = sbr.rel (%p270) target = $region32
        $region31: #{tpu_custom_call.1} parent=11 // pred_region
          %s273 = smul.u32 32, %s30
          %s275 = ssub.s32 2048, 2048
          %276 = vsyncadd [#allocation8], %s275
          %s277 = smul.addr %s273, 64
          %s278 = scalar_lea.hbm %s5, %s277
          %s279 = sshll.u32 [#allocation9], 4
          %s280 = int_to_ptr.vmem [resolvable:$true] %s279
          %285 = dma.hbm_to_vmem [thread:$0]  %s278, 2048, %s280, [#allocation8], 64, 64, 4
        $region32: #{tpu_custom_call.1} parent=11 // pred_fallthru
          _
        // Predicated region
        $region33: #{tpu_custom_call.1} parent=11 // pred_check
          %p286 = pneg %p199
        $region34: #{tpu_custom_call.1} parent=11 // pred_check_branch
          %288 = sbr.rel (%p286) target = $region36
        $region35: #{tpu_custom_call.1} parent=11 // pred_region
          _
        $region36: #{tpu_custom_call.1} parent=11 // pred_fallthru
          _
      $region12: #{tpu_custom_call.1} parent=5 // pred_fallthru
        _
      %p289 = scmp.lt.s32.totalorder %s20, 2
      // Predicated region
      $region37: #{tpu_custom_call.1} parent=5 // pred_check
        %p290 = pneg %p289
      $region38: #{tpu_custom_call.1} parent=5 // pred_check_branch
        %292 = sbr.rel (%p290) target = $region40
      $region39: #{tpu_custom_call.1} parent=5 // pred_region
        // Predicated region
        $region41: #{tpu_custom_call.1} parent=39 // pred_check
          %p293 = pneg %p52
        $region42: #{tpu_custom_call.1} parent=39 // pred_check_branch
          %295 = sbr.rel (%p293) target = $region44
        $region43: #{tpu_custom_call.1} parent=39 // pred_region
          %s296 = sand.u32 %s42, 1
          %s297 = scalar_lea.sflag [#allocation5], %s296
          %s298 = sand.u32 %s42, 1
          %s299 = smul.addr %s298, 32
          %s300 = scalar_lea.vmem [#allocation4], %s299
          %s301 = smul.u32 4, %s27
          %s303 = ssub.s32 512, 512
          %304 = vsyncadd %s297, %s303
          %s305 = smul.addr %s301, 128
          %s306 = scalar_lea.hbm %s0, %s305
          %s307 = sshll.u32 %s300, 4
          %s308 = int_to_ptr.vmem [resolvable:$true] %s307
          %313 = dma.hbm_to_vmem [thread:$0]  %s306, 512, %s308, %s297, 128, 128, 8
        $region44: #{tpu_custom_call.1} parent=39 // pred_fallthru
          _
      $region40: #{tpu_custom_call.1} parent=5 // pred_fallthru
        _
      %p314 = scmp.le.s32.totalorder 1, %s20
      %p315 = scmp.lt.s32.totalorder %s20, 3
      %p316 = pnand %p314, %p315
      %p317 = pneg %p316
      // Predicated region
      $region45: #{tpu_custom_call.1} parent=5 // pred_check
        _
      $region46: #{tpu_custom_call.1} parent=5 // pred_check_branch
        %319 = sbr.rel (%p316) target = $region48
      $region47: #{tpu_custom_call.1} parent=5 // pred_region
        %s320 = ssub.s32 %s20, 1
        %s321 = sand.u32 %s45, 1
        %s322 = scalar_lea.sflag [#allocation5], %s321
        %s323 = sand.u32 %s45, 1
        %s324 = smul.addr %s323, 32
        %s325 = scalar_lea.vmem [#allocation4], %s324
        // Predicated region
        $region49: #{tpu_custom_call.1} parent=47 // pred_check
          %p326 = pneg %p58
        $region50: #{tpu_custom_call.1} parent=47 // pred_check_branch
          %328 = sbr.rel (%p326) target = $region52
        $region51: #{tpu_custom_call.1} parent=47 // pred_region
          %329 = dma.done %s322, 512
        $region52: #{tpu_custom_call.1} parent=47 // pred_fallthru
          _
        // Predicated region
        $region53: #{tpu_custom_call.1} parent=47 // pred_check
          %p330 = pneg %p126
        $region54: #{tpu_custom_call.1} parent=47 // pred_check_branch
          %332 = sbr.rel (%p330) target = $region56
        $region55: #{tpu_custom_call.1} parent=47 // pred_region
          %333 = dma.done [#allocation8], 2048
        $region56: #{tpu_custom_call.1} parent=47 // pred_fallthru
          _
        // Predicated region
        $region57: #{tpu_custom_call.1} parent=47 // pred_check
          %p334 = pneg %p178
        $region58: #{tpu_custom_call.1} parent=47 // pred_check_branch
          %336 = sbr.rel (%p334) target = $region60
        $region59: #{tpu_custom_call.1} parent=47 // pred_region
          %337 = dma.done [#allocation8], 2048
        $region60: #{tpu_custom_call.1} parent=47 // pred_fallthru
          _
        %s338 = sand.u32 %s45, 1
        %s339 = scalar_lea.sflag [#allocation5], %s338
        %s340 = sand.u32 %s45, 1
        %s341 = smul.addr %s340, 32
        %s342 = scalar_lea.vmem [#allocation4], %s341
        %p343 = pneg %p58
        %p344 = pneg %p55
        %p345 = pneg %p79
        %p346 = pneg %p76
        %p347 = pneg %p100
        %p348 = pneg %p97
        %p349 = pneg %p126
        %p350 = pneg %p123
        %s351 = smul.u32 2, %s30
        %p352 = scmp.lt.s32.totalorder %s351, 1
        %s353 = scalar_select %p352, %s351, 1
        %s354 = scalar_lea.vmem %s4, %s353
        %p355 = pneg %p152
        %p356 = pneg %p149
        %p357 = pneg %p178
        %p358 = pneg %p175
        %p359 = pneg %p199
        %p360 = pneg %p196
        %p361 = pneg %p225
        %p362 = pneg %p222
        %s363 = sand.u32 %s212, 1
        %s364 = scalar_lea.sflag [#allocation6], %s363
        %s365 = sand.u32 %s212, 1
        %s366 = smul.addr %s365, 32
        %s367 = scalar_lea.vmem [#allocation10], %s366
        %s368 = smul.u32 4, %s29
        %s369 = smul.u32 2, %s30
        %s370 = smul.u32 2, %s30
        %p371 = scmp.lt.s32.totalorder %s370, 1
        %s372 = scalar_select %p371, %s370, 1
        %s373 = scalar_lea.vmem %s4, %s372
        %s374 = smul.u32 2, %s30
        %s375 = smul.u32 32, %s30
        %s376 = smul.u32 4, %s29
        %p378 = scmp.eq.s32.totalorder %s30, 0
        // Predicated region
        $region61: #{tpu_custom_call.1} parent=47 // pred_check
          %p379 = pneg %p378
        $region62: #{tpu_custom_call.1} parent=47 // pred_check_branch
          %381 = sbr.rel (%p379) target = $region64
        $region63: #{tpu_custom_call.1} parent=47 // pred_region
          %v382 = vld [vmem:[%s325] sm:$0xff]
          %v383 = vld [vmem:[%s325 + $0x8] sm:$0xff]
          %v384 = vld [vmem:[%s325 + $0x10] sm:$0xff]
          %v385 = vld [vmem:[%s325 + $0x18] sm:$0xff]
          %386 = vadd.xlane.f32.xlu0 %v382
          %v387 = vpop.xlane.xlu0 %386
          %388 = vadd.xlane.f32.xlu0 %v383
          %v389 = vpop.xlane.xlu0 %388
          %390 = vadd.xlane.f32.xlu0 %v384
          %v391 = vpop.xlane.xlu0 %390
          %392 = vadd.xlane.f32.xlu0 %v385
          %v393 = vpop.xlane.xlu0 %392
          %v394 = vrcp.pop 128.0
          %v395 = vmul.f32 %v387, %v394
          %v396 = vmul.f32 %v389, %v394
          %v397 = vmul.f32 %v391, %v394
          %v398 = vmul.f32 %v393, %v394
          %v399 = vmul.f32 %v382, %v382
          %v400 = vmul.f32 %v383, %v383
          %v401 = vmul.f32 %v384, %v384
          %v402 = vmul.f32 %v385, %v385
          %403 = vadd.xlane.f32.xlu0 %v399
          %v404 = vpop.xlane.xlu0 %403
          %405 = vadd.xlane.f32.xlu0 %v400
          %v406 = vpop.xlane.xlu0 %405
          %407 = vadd.xlane.f32.xlu0 %v401
          %v408 = vpop.xlane.xlu0 %407
          %409 = vadd.xlane.f32.xlu0 %v402
          %v410 = vpop.xlane.xlu0 %409
          %v411 = vmul.f32 %v404, %v394
          %v412 = vmul.f32 %v406, %v394
          %v413 = vmul.f32 %v408, %v394
          %v414 = vmul.f32 %v410, %v394
          %v415 = vmul.f32 %v395, %v395
          %v416 = vmul.f32 %v396, %v396
          %v417 = vmul.f32 %v397, %v397
          %v418 = vmul.f32 %v398, %v398
          %v419 = vsub.f32 %v411, %v415
          %v420 = vsub.f32 %v412, %v416
          %v421 = vsub.f32 %v413, %v417
          %v422 = vsub.f32 %v414, %v418
          %v423 = vsub.f32 %v382, %v395
          %v424 = vsub.f32 %v383, %v396
          %v425 = vsub.f32 %v384, %v397
          %v426 = vsub.f32 %v385, %v398
          %v427 = vadd.f32 %v419, 1e-05
          %v428 = vadd.f32 %v420, 1e-05
          %v429 = vadd.f32 %v421, 1e-05
          %v430 = vadd.f32 %v422, 1e-05
          %v431 = vrsqrt.pop %v427
          %v432 = vrsqrt.pop %v428
          %v433 = vrsqrt.pop %v429
          %v434 = vrsqrt.pop %v430
          %v435 = vmul.f32 %v423, %v431
          %v436 = vmul.f32 %v424, %v432
          %v437 = vmul.f32 %v425, %v433
          %v438 = vmul.f32 %v426, %v434
          %v439 = vld [vmem:[%s1] sm:$0x1]
          %v441 = vlaneseq
          %v442 = vshrl.u32 %v441, 7
          %v443 = vsub.s32 0, %v442
          %v444 = vrot.slane %v439, %v443
          %v446 = vmul.f32 %v435, %v444
          %v447 = vmul.f32 %v436, %v444
          %v448 = vmul.f32 %v437, %v444
          %v449 = vmul.f32 %v438, %v444
          %v450 = vld [vmem:[%s2] sm:$0x1]
          %v452 = vlaneseq
          %v453 = vshrl.u32 %v452, 7
          %v454 = vsub.s32 0, %v453
          %v455 = vrot.slane %v450, %v454
          %v457 = vadd.f32 %v446, %v455
          %v458 = vadd.f32 %v447, %v455
          %v459 = vadd.f32 %v448, %v455
          %v460 = vadd.f32 %v449, %v455
          %v461 = vpack.c.bf16 %v458, %v457
          %v462 = vpack.c.bf16 %v460, %v459
          %463 = vst [vmem:[#allocation3] sm:$0xff] %v461
          %464 = vst [vmem:[#allocation3 + $0x8] sm:$0xff] %v462
          %465 = vst [vmem:[#allocation2] sm:$0xff] 0.0
          %466 = vst [vmem:[#allocation2 + $0x8] sm:$0xff] 0.0
          %467 = vst [vmem:[#allocation2 + $0x10] sm:$0xff] 0.0
          %468 = vst [vmem:[#allocation2 + $0x18] sm:$0xff] 0.0
        $region64: #{tpu_custom_call.1} parent=47 // pred_fallthru
          _
        %v469 = vld [vmem:[#allocation3] sm:$0xff]
        %v470 = vld [vmem:[#allocation3 + $0x8] sm:$0xff]
        %v471 = vld [vmem:[#allocation7] sm:$0xff]
        %v472 = vld [vmem:[#allocation7 + $0x8] sm:$0xff]
        %v473 = vld [vmem:[#allocation7 + $0x10] sm:$0xff]
        %v474 = vld [vmem:[#allocation7 + $0x18] sm:$0xff]
        %v475 = vld [vmem:[#allocation7 + $0x20] sm:$0xff]
        %v476 = vld [vmem:[#allocation7 + $0x28] sm:$0xff]
        %v477 = vld [vmem:[#allocation7 + $0x30] sm:$0xff]
        %v478 = vld [vmem:[#allocation7 + $0x38] sm:$0xff]
        %v479 = vld [vmem:[#allocation7 + $0x40] sm:$0xff]
        %v480 = vld [vmem:[#allocation7 + $0x48] sm:$0xff]
        %v481 = vld [vmem:[#allocation7 + $0x50] sm:$0xff]
        %v482 = vld [vmem:[#allocation7 + $0x58] sm:$0xff]
        %v483 = vld [vmem:[#allocation7 + $0x60] sm:$0xff]
        %v484 = vld [vmem:[#allocation7 + $0x68] sm:$0xff]
        %v485 = vld [vmem:[#allocation7 + $0x70] sm:$0xff]
        %v486 = vld [vmem:[#allocation7 + $0x78] sm:$0xff]
        %v487 = vld [vmem:[%s373] sm:$0x3]
        %v489 = vlaneseq
        %v490 = vshrl.u32 %v489, 7
        %v491 = vsub.s32 0, %v490
        %v492 = vrot.slane %v487, %v491
        %v493 = vlaneseq
        %v494 = vshrl.u32 %v493, 7
        %v495 = vsub.s32 1, %v494
        %v496 = vrot.slane %v487, %v495
        %v515 = vunpack.c.l.b16 %v471
        %v516 = vunpack.c.h.b16 %v471
        %v517 = vunpack.c.l.b16 %v472
        %v518 = vunpack.c.h.b16 %v472
        %v519 = vunpack.c.l.b16 %v473
        %v520 = vunpack.c.h.b16 %v473
        %v521 = vunpack.c.l.b16 %v474
        %v522 = vunpack.c.h.b16 %v474
        %v523 = vunpack.c.l.b16 %v475
        %v524 = vunpack.c.h.b16 %v475
        %v525 = vunpack.c.l.b16 %v476
        %v526 = vunpack.c.h.b16 %v476
        %v527 = vunpack.c.l.b16 %v477
        %v528 = vunpack.c.h.b16 %v477
        %v529 = vunpack.c.l.b16 %v478
        %v530 = vunpack.c.h.b16 %v478
        %v531 = vunpack.c.l.b16 %v479
        %v532 = vunpack.c.h.b16 %v479
        %v533 = vunpack.c.l.b16 %v480
        %v534 = vunpack.c.h.b16 %v480
        %v535 = vunpack.c.l.b16 %v481
        %v536 = vunpack.c.h.b16 %v481
        %v537 = vunpack.c.l.b16 %v482
        %v538 = vunpack.c.h.b16 %v482
        %v539 = vunpack.c.l.b16 %v483
        %v540 = vunpack.c.h.b16 %v483
        %v541 = vunpack.c.l.b16 %v484
        %v542 = vunpack.c.h.b16 %v484
        %v543 = vunpack.c.l.b16 %v485
        %v544 = vunpack.c.h.b16 %v485
        %v545 = vunpack.c.l.b16 %v486
        %v546 = vunpack.c.h.b16 %v486
        %v547 = vpack.c.b16 %v517, %v515
        %v548 = vpack.c.b16 %v518, %v516
        %v549 = vpack.c.b16 %v521, %v519
        %v550 = vpack.c.b16 %v522, %v520
        %v551 = vpack.c.b16 %v525, %v523
        %v552 = vpack.c.b16 %v526, %v524
        %v553 = vpack.c.b16 %v529, %v527
        %v554 = vpack.c.b16 %v530, %v528
        %v555 = vpack.c.b16 %v533, %v531
        %v556 = vpack.c.b16 %v534, %v532
        %v557 = vpack.c.b16 %v537, %v535
        %v558 = vpack.c.b16 %v538, %v536
        %v559 = vpack.c.b16 %v541, %v539
        %v560 = vpack.c.b16 %v542, %v540
        %v561 = vpack.c.b16 %v545, %v543
        %v562 = vpack.c.b16 %v546, %v544
        %579 = vmatprep.subr.bf16.mxu0 %v548
        %580 = vmatpush1.bf16.msra.mxu0 %v547
        %581 = vmatprep.subr.bf16.mxu0 %v550
        %582 = vmatpush1.bf16.msra.mxu0 %v549
        %583 = vmatprep.subr.bf16.mxu0 %v552
        %584 = vmatpush1.bf16.msra.mxu0 %v551
        %585 = vmatprep.subr.bf16.mxu0 %v554
        %586 = vmatpush1.bf16.msra.mxu0 %v553
        %587 = vmatprep.subr.bf16.mxu0 %v556
        %588 = vmatpush1.bf16.msra.mxu0 %v555
        %589 = vmatprep.subr.bf16.mxu0 %v558
        %590 = vmatpush1.bf16.msra.mxu0 %v557
        %591 = vmatprep.subr.bf16.mxu0 %v560
        %592 = vmatpush1.bf16.msra.mxu0 %v559
        %593 = vmatprep.subr.bf16.mxu0 %v562
        %594 = vmatpush1.bf16.msra.mxu0 %v561
        %595 = vmatprep.subr.bf16.mxu0 0
        %596 = vmatpush1.bf16.msra.mxu0 0
        %597 = vmatprep.subr.bf16.mxu0 0
        %598 = vmatpush1.bf16.msra.mxu0 0
        %599 = vmatprep.subr.bf16.mxu0 0
        %600 = vmatpush1.bf16.msra.mxu0 0
        %601 = vmatprep.subr.bf16.mxu0 0
        %602 = vmatpush1.bf16.msra.mxu0 0
        %603 = vmatprep.subr.bf16.mxu0 0
        %604 = vmatpush1.bf16.msra.mxu0 0
        %605 = vmatprep.subr.bf16.mxu0 0
        %606 = vmatpush1.bf16.msra.mxu0 0
        %607 = vmatprep.subr.bf16.mxu0 0
        %608 = vmatpush1.bf16.msra.mxu0 0
        %609 = vmatprep.subr.bf16.mxu0 0
        %610 = vmatpush1.bf16.msra.mxu0 0
        %611 = vmatprep.mubr.bf16.mxu0 0
        %612 = vmatmul.mubr.bf16.gmra.mrb[0].mxu0 %v469
        %v613 = vpop.f32.mrb[0].mxu0
        %v614 = vadd.f32 %v492, %v613
        %v615 = vpop.f32.mrb[0].mxu0
        %v616 = vadd.f32 %v496, %v615
        %v617 = vpop.f32.mrb[0].mxu0
        %v618 = vadd.f32 %v492, %v617
        %v619 = vpop.f32.mrb[0].mxu0
        %v620 = vadd.f32 %v496, %v619
        %621 = vmatprep.mubr.bf16.mxu0 0
        %622 = vmatmul.mubr.bf16.gmra.mrb[0].mxu0 %v470
        %v623 = vpop.f32.mrb[0].mxu0
        %v624 = vadd.f32 %v492, %v623
        %v625 = vpop.f32.mrb[0].mxu0
        %v626 = vadd.f32 %v496, %v625
        %v627 = vpop.f32.mrb[0].mxu0
        %v628 = vadd.f32 %v492, %v627
        %v629 = vpop.f32.mrb[0].mxu0
        %v630 = vadd.f32 %v496, %v629
        %631 = vdwg.mxu0
        %v632 = vmul.f32 %v614, %v614
        %v633 = vmul.f32 %v616, %v616
        %v634 = vmul.f32 %v618, %v618
        %v635 = vmul.f32 %v620, %v620
        %v636 = vmul.f32 %v624, %v624
        %v637 = vmul.f32 %v626, %v626
        %v638 = vmul.f32 %v628, %v628
        %v639 = vmul.f32 %v630, %v630
        %v640 = vmul.f32 %v614, %v632
        %v641 = vmul.f32 %v616, %v633
        %v642 = vmul.f32 %v618, %v634
        %v643 = vmul.f32 %v620, %v635
        %v644 = vmul.f32 %v624, %v636
        %v645 = vmul.f32 %v626, %v637
        %v646 = vmul.f32 %v628, %v638
        %v647 = vmul.f32 %v630, %v639
        %v648 = vmul.f32 %v640, 0.044715
        %v649 = vmul.f32 %v641, 0.044715
        %v650 = vmul.f32 %v642, 0.044715
        %v651 = vmul.f32 %v643, 0.044715
        %v652 = vmul.f32 %v644, 0.044715
        %v653 = vmul.f32 %v645, 0.044715
        %v654 = vmul.f32 %v646, 0.044715
        %v655 = vmul.f32 %v647, 0.044715
        %v656 = vadd.f32 %v614, %v648
        %v657 = vadd.f32 %v616, %v649
        %v658 = vadd.f32 %v618, %v650
        %v659 = vadd.f32 %v620, %v651
        %v660 = vadd.f32 %v624, %v652
        %v661 = vadd.f32 %v626, %v653
        %v662 = vadd.f32 %v628, %v654
        %v663 = vadd.f32 %v630, %v655
        %v664 = vmul.f32 %v656, 0.7978846
        %v665 = vmul.f32 %v657, 0.7978846
        %v666 = vmul.f32 %v658, 0.7978846
        %v667 = vmul.f32 %v659, 0.7978846
        %v668 = vmul.f32 %v660, 0.7978846
        %v669 = vmul.f32 %v661, 0.7978846
        %v670 = vmul.f32 %v662, 0.7978846
        %v671 = vmul.f32 %v663, 0.7978846
        %v672 = vtanh.pop %v664
        %v673 = vtanh.pop %v665
        %v674 = vtanh.pop %v666
        %v675 = vtanh.pop %v667
        %v676 = vtanh.pop %v668
        %v677 = vtanh.pop %v669
        %v678 = vtanh.pop %v670
        %v679 = vtanh.pop %v671
        %v680 = vadd.f32 %v672, 1.0
        %v681 = vadd.f32 %v673, 1.0
        %v682 = vadd.f32 %v674, 1.0
        %v683 = vadd.f32 %v675, 1.0
        %v684 = vadd.f32 %v676, 1.0
        %v685 = vadd.f32 %v677, 1.0
        %v686 = vadd.f32 %v678, 1.0
        %v687 = vadd.f32 %v679, 1.0
        %v688 = vmul.f32 %v680, 0.5
        %v689 = vmul.f32 %v681, 0.5
        %v690 = vmul.f32 %v682, 0.5
        %v691 = vmul.f32 %v683, 0.5
        %v692 = vmul.f32 %v684, 0.5
        %v693 = vmul.f32 %v685, 0.5
        %v694 = vmul.f32 %v686, 0.5
        %v695 = vmul.f32 %v687, 0.5
        %v696 = vmul.f32 %v614, %v688
        %v697 = vmul.f32 %v616, %v689
        %v698 = vmul.f32 %v618, %v690
        %v699 = vmul.f32 %v620, %v691
        %v700 = vmul.f32 %v624, %v692
        %v701 = vmul.f32 %v626, %v693
        %v702 = vmul.f32 %v628, %v694
        %v703 = vmul.f32 %v630, %v695
        %v704 = vld [vmem:[#allocation2] sm:$0xff]
        %v705 = vld [vmem:[#allocation2 + $0x8] sm:$0xff]
        %v706 = vld [vmem:[#allocation2 + $0x10] sm:$0xff]
        %v707 = vld [vmem:[#allocation2 + $0x18] sm:$0xff]
        %v708 = vpack.c.bf16 %v698, %v696
        %v709 = vpack.c.bf16 %v699, %v697
        %v710 = vpack.c.bf16 %v702, %v700
        %v711 = vpack.c.bf16 %v703, %v701
        %v712 = vld [vmem:[#allocation9] sm:$0xf]
        %v713 = vld [vmem:[#allocation9 + $0x4] sm:$0xf]
        %v714 = vld [vmem:[#allocation9 + $0x8] sm:$0xf]
        %v715 = vld [vmem:[#allocation9 + $0xc] sm:$0xf]
        %v716 = vld [vmem:[#allocation9 + $0x10] sm:$0xf]
        %v717 = vld [vmem:[#allocation9 + $0x14] sm:$0xf]
        %v718 = vld [vmem:[#allocation9 + $0x18] sm:$0xf]
        %v719 = vld [vmem:[#allocation9 + $0x1c] sm:$0xf]
        %v720 = vld [vmem:[#allocation9 + $0x20] sm:$0xf]
        %v721 = vld [vmem:[#allocation9 + $0x24] sm:$0xf]
        %v722 = vld [vmem:[#allocation9 + $0x28] sm:$0xf]
        %v723 = vld [vmem:[#allocation9 + $0x2c] sm:$0xf]
        %v724 = vld [vmem:[#allocation9 + $0x30] sm:$0xf]
        %v725 = vld [vmem:[#allocation9 + $0x34] sm:$0xf]
        %v726 = vld [vmem:[#allocation9 + $0x38] sm:$0xf]
        %v727 = vld [vmem:[#allocation9 + $0x3c] sm:$0xf]
        %v728 = vld [vmem:[#allocation9 + $0x40] sm:$0xf]
        %v729 = vld [vmem:[#allocation9 + $0x44] sm:$0xf]
        %v730 = vld [vmem:[#allocation9 + $0x48] sm:$0xf]
        %v731 = vld [vmem:[#allocation9 + $0x4c] sm:$0xf]
        %v732 = vld [vmem:[#allocation9 + $0x50] sm:$0xf]
        %v733 = vld [vmem:[#allocation9 + $0x54] sm:$0xf]
        %v734 = vld [vmem:[#allocation9 + $0x58] sm:$0xf]
        %v735 = vld [vmem:[#allocation9 + $0x5c] sm:$0xf]
        %v736 = vld [vmem:[#allocation9 + $0x60] sm:$0xf]
        %v737 = vld [vmem:[#allocation9 + $0x64] sm:$0xf]
        %v738 = vld [vmem:[#allocation9 + $0x68] sm:$0xf]
        %v739 = vld [vmem:[#allocation9 + $0x6c] sm:$0xf]
        %v740 = vld [vmem:[#allocation9 + $0x70] sm:$0xf]
        %v741 = vld [vmem:[#allocation9 + $0x74] sm:$0xf]
        %v742 = vld [vmem:[#allocation9 + $0x78] sm:$0xf]
        %v743 = vld [vmem:[#allocation9 + $0x7c] sm:$0xf]
        %v776 = vunpack.c.l.b16 %v712
        %v777 = vunpack.c.l.b16 %v713
        %v778 = vunpack.c.l.b16 %v714
        %v779 = vunpack.c.l.b16 %v715
        %v780 = vunpack.c.l.b16 %v716
        %v781 = vunpack.c.l.b16 %v717
        %v782 = vunpack.c.l.b16 %v718
        %v783 = vunpack.c.l.b16 %v719
        %v784 = vunpack.c.l.b16 %v720
        %v785 = vunpack.c.l.b16 %v721
        %v786 = vunpack.c.l.b16 %v722
        %v787 = vunpack.c.l.b16 %v723
        %v788 = vunpack.c.l.b16 %v724
        %v789 = vunpack.c.l.b16 %v725
        %v790 = vunpack.c.l.b16 %v726
        %v791 = vunpack.c.l.b16 %v727
        %v792 = vunpack.c.l.b16 %v728
        %v793 = vunpack.c.l.b16 %v729
        %v794 = vunpack.c.l.b16 %v730
        %v795 = vunpack.c.l.b16 %v731
        %v796 = vunpack.c.l.b16 %v732
        %v797 = vunpack.c.l.b16 %v733
        %v798 = vunpack.c.l.b16 %v734
        %v799 = vunpack.c.l.b16 %v735
        %v800 = vunpack.c.l.b16 %v736
        %v801 = vunpack.c.l.b16 %v737
        %v802 = vunpack.c.l.b16 %v738
        %v803 = vunpack.c.l.b16 %v739
        %v804 = vunpack.c.l.b16 %v740
        %v805 = vunpack.c.l.b16 %v741
        %v806 = vunpack.c.l.b16 %v742
        %v807 = vunpack.c.l.b16 %v743
        %v808 = vpack.c.b16 %v777, %v776
        %v809 = vpack.c.b16 %v779, %v778
        %v810 = vpack.c.b16 %v781, %v780
        %v811 = vpack.c.b16 %v783, %v782
        %v812 = vpack.c.b16 %v785, %v784
        %v813 = vpack.c.b16 %v787, %v786
        %v814 = vpack.c.b16 %v789, %v788
        %v815 = vpack.c.b16 %v791, %v790
        %v816 = vpack.c.b16 %v793, %v792
        %v817 = vpack.c.b16 %v795, %v794
        %v818 = vpack.c.b16 %v797, %v796
        %v819 = vpack.c.b16 %v799, %v798
        %v820 = vpack.c.b16 %v801, %v800
        %v821 = vpack.c.b16 %v803, %v802
        %v822 = vpack.c.b16 %v805, %v804
        %v823 = vpack.c.b16 %v807, %v806
        %840 = vmatprep.subr.bf16.mxu0 0
        %841 = vmatpush1.bf16.msra.mxu0 %v808
        %842 = vmatprep.subr.bf16.mxu0 0
        %843 = vmatpush1.bf16.msra.mxu0 %v809
        %844 = vmatprep.subr.bf16.mxu0 0
        %845 = vmatpush1.bf16.msra.mxu0 %v810
        %846 = vmatprep.subr.bf16.mxu0 0
        %847 = vmatpush1.bf16.msra.mxu0 %v811
        %848 = vmatprep.subr.bf16.mxu0 0
        %849 = vmatpush1.bf16.msra.mxu0 %v812
        %850 = vmatprep.subr.bf16.mxu0 0
        %851 = vmatpush1.bf16.msra.mxu0 %v813
        %852 = vmatprep.subr.bf16.mxu0 0
        %853 = vmatpush1.bf16.msra.mxu0 %v814
        %854 = vmatprep.subr.bf16.mxu0 0
        %855 = vmatpush1.bf16.msra.mxu0 %v815
        %856 = vmatprep.subr.bf16.mxu0 0
        %857 = vmatpush1.bf16.msra.mxu0 %v816
        %858 = vmatprep.subr.bf16.mxu0 0
        %859 = vmatpush1.bf16.msra.mxu0 %v817
        %860 = vmatprep.subr.bf16.mxu0 0
        %861 = vmatpush1.bf16.msra.mxu0 %v818
        %862 = vmatprep.subr.bf16.mxu0 0
        %863 = vmatpush1.bf16.msra.mxu0 %v819
        %864 = vmatprep.subr.bf16.mxu0 0
        %865 = vmatpush1.bf16.msra.mxu0 %v820
        %866 = vmatprep.subr.bf16.mxu0 0
        %867 = vmatpush1.bf16.msra.mxu0 %v821
        %868 = vmatprep.subr.bf16.mxu0 0
        %869 = vmatpush1.bf16.msra.mxu0 %v822
        %870 = vmatprep.subr.bf16.mxu0 0
        %871 = vmatpush1.bf16.msra.mxu0 %v823
        %872 = vmatprep.mubr.bf16.mxu0 %v709
        %873 = vmatmul.mubr.bf16.gmra.mrb[0].mxu0 %v708
        %v874 = vpop.f32.mrb[0].mxu0
        %v875 = vadd.f32 0.0, %v874
        %v876 = vpop.f32.mrb[0].mxu0
        %v877 = vpop.f32.mrb[0].mxu0
        %v878 = vadd.f32 0.0, %v877
        %v879 = vpop.f32.mrb[0].mxu0
        %880 = vmatprep.mubr.bf16.mxu0 %v711
        %881 = vmatmul.mubr.bf16.gmra.mrb[0].mxu0 %v710
        %v882 = vpop.f32.mrb[0].mxu0
        %v883 = vadd.f32 0.0, %v882
        %v884 = vpop.f32.mrb[0].mxu0
        %v885 = vpop.f32.mrb[0].mxu0
        %v886 = vadd.f32 0.0, %v885
        %v887 = vpop.f32.mrb[0].mxu0
        %888 = vdwg.mxu0
        %v889 = vadd.f32 %v704, %v875
        %v890 = vadd.f32 %v705, %v878
        %v891 = vadd.f32 %v706, %v883
        %v892 = vadd.f32 %v707, %v886
        %893 = vst [vmem:[#allocation2] sm:$0xff] %v889
        %894 = vst [vmem:[#allocation2 + $0x8] sm:$0xff] %v890
        %895 = vst [vmem:[#allocation2 + $0x10] sm:$0xff] %v891
        %896 = vst [vmem:[#allocation2 + $0x18] sm:$0xff] %v892
        // Predicated region
        $region65: #{tpu_custom_call.1} parent=47 // pred_check
          %p897 = pneg %p378
        $region66: #{tpu_custom_call.1} parent=47 // pred_check_branch
          %899 = sbr.rel (%p897) target = $region68
        $region67: #{tpu_custom_call.1} parent=47 // pred_region
          %v900 = vld [vmem:[%s325] sm:$0xff]
          %v901 = vld [vmem:[%s325 + $0x8] sm:$0xff]
          %v902 = vld [vmem:[%s325 + $0x10] sm:$0xff]
          %v903 = vld [vmem:[%s325 + $0x18] sm:$0xff]
          %v904 = vld [vmem:[#allocation2] sm:$0xff]
          %v905 = vld [vmem:[#allocation2 + $0x8] sm:$0xff]
          %v906 = vld [vmem:[#allocation2 + $0x10] sm:$0xff]
          %v907 = vld [vmem:[#allocation2 + $0x18] sm:$0xff]
          %v908 = vadd.f32 %v900, %v904
          %v909 = vadd.f32 %v901, %v905
          %v910 = vadd.f32 %v902, %v906
          %v911 = vadd.f32 %v903, %v907
          %v912 = vld [vmem:[%s6] sm:$0x1]
          %v914 = vlaneseq
          %v915 = vshrl.u32 %v914, 7
          %v916 = vsub.s32 0, %v915
          %v917 = vrot.slane %v912, %v916
          %v919 = vadd.f32 %v908, %v917
          %v920 = vadd.f32 %v909, %v917
          %v921 = vadd.f32 %v910, %v917
          %v922 = vadd.f32 %v911, %v917
          %923 = vst [vmem:[%s367] sm:$0xff] %v919
          %924 = vst [vmem:[%s367 + $0x8] sm:$0xff] %v920
          %925 = vst [vmem:[%s367 + $0x10] sm:$0xff] %v921
          %926 = vst [vmem:[%s367 + $0x18] sm:$0xff] %v922
        $region68: #{tpu_custom_call.1} parent=47 // pred_fallthru
          _
        %s927 = sand.u32 %s212, 1
        %s928 = scalar_lea.sflag [#allocation6], %s927
        %s929 = sand.u32 %s212, 1
        %s930 = smul.addr %s929, 32
        %s931 = scalar_lea.vmem [#allocation10], %s930
        // Predicated region
        $region69: #{tpu_custom_call.1} parent=47 // pred_check
          %p932 = pneg %p222
        $region70: #{tpu_custom_call.1} parent=47 // pred_check_branch
          %934 = sbr.rel (%p932) target = $region72
        $region71: #{tpu_custom_call.1} parent=47 // pred_region
          %s935 = smul.u32 4, %s29
          %s937 = ssub.s32 512, 512
          %938 = vsyncadd %s928, %s937
          %s939 = smul.addr %s935, 128
          %s940 = scalar_lea.hbm %s7, %s939
          %s941 = sshll.u32 %s931, 4
          %s942 = int_to_ptr.vmem [resolvable:$true] %s941
          %947 = dma.vmem_to_hbm [thread:$0]  %s942, 512, %s940, %s928, 128, 128, 8
        $region72: #{tpu_custom_call.1} parent=47 // pred_fallthru
          _
      $region48: #{tpu_custom_call.1} parent=5 // pred_fallthru
        _
      %p948 = scmp.le.s32.totalorder 2, %s20
      // Predicated region
      $region73: #{tpu_custom_call.1} parent=5 // pred_check
        %p949 = pneg %p948
      $region74: #{tpu_custom_call.1} parent=5 // pred_check_branch
        %951 = sbr.rel (%p949) target = $region76
      $region75: #{tpu_custom_call.1} parent=5 // pred_region
        %s952 = ssub.s32 %s20, 2
        // Predicated region
        $region77: #{tpu_custom_call.1} parent=75 // pred_check
          %p953 = pneg %p228
        $region78: #{tpu_custom_call.1} parent=75 // pred_check_branch
          %955 = sbr.rel (%p953) target = $region80
        $region79: #{tpu_custom_call.1} parent=75 // pred_region
          %s956 = sand.u32 %s213, 1
          %s957 = scalar_lea.sflag [#allocation6], %s956
          %s958 = sand.u32 %s213, 1
          %s959 = smul.addr %s958, 32
          %s960 = scalar_lea.vmem [#allocation10], %s959
          %961 = dma.done %s957, 512
        $region80: #{tpu_custom_call.1} parent=75 // pred_fallthru
          _
      $region76: #{tpu_custom_call.1} parent=5 // pred_fallthru
        _
    $region6: #{tpu_custom_call.1} parent=1 // loop_footer
      %s24 = sadd.s32 1, %s20
    $region7: #{tpu_custom_call.1} parent=1 // loop_footer_branch
      %19 = sbr.rel target = $region3
    $region8: #{tpu_custom_call.1} parent=1 // loop_exit
      _
    %962 = vsyncpa [#allocation5], 1
    %s963 = scalar_lea.sflag [#allocation5], 1
    %964 = vsyncpa %s963, 1
    %965 = vsyncpa [#allocation8], 1
    %966 = vsyncpa [#allocation6], 1
    %s967 = scalar_lea.sflag [#allocation6], 1
    %968 = vsyncpa %s967, 1

</llo_original>
